<compile_context>
chip_gen: v6e
topology: v6e:2x2x1
jax: 0.10.0
libtpu: 0.0.40
codegen_flags: <defaults>
</compile_context>

<pallas_src>
import functools

import jax
import jax.numpy as jnp
from jax.experimental import pallas as pl
from jax.experimental.pallas import tpu as pltpu


LANE = 128
W_RESIDENT_MAX = 4 * 1024 * 1024   # keep weight fully VMEM-resident if <= 4 MiB
S_RESIDENT_MAX = 8 * 1024 * 1024   # keep support fully VMEM-resident if <= 8 MiB


def _round_up(x, m):
    return ((x + m - 1) // m) * m


def _itemsize(dt):
    return jnp.dtype(dt).itemsize


def _pick_node_tile(n):
    """Node-axis tile (phase-1 rows, phase-2 rows & reduction): as large as
    possible, but leave >= 2 blocks on the parallel axis so both v7x
    TensorCores get work."""
    n128 = _round_up(n, LANE)
    for t in (512, 256, 128):
        if n128 >= 2 * t:
            return t
    return LANE


def _vmem_limit(need_bytes):
    """Right-sized scoped-VMEM request (never the full physical VMEM)."""
    lim = int(need_bytes * 1.5) + (4 << 20)
    return max(16 << 20, min(lim, 48 << 20))


def _compiler_params(vmem_limit_bytes):
    return pltpu.CompilerParams(
        dimension_semantics=("parallel", "arbitrary"),
        vmem_limit_bytes=vmem_limit_bytes,
    )


# ---------------------------------------------------------------------------
# Phase 1 kernels: support = (x [+ rb * noise]) @ w
#   grid = (rows // tnode, f_in_padded // tk)  -> each x tile read once
# ---------------------------------------------------------------------------
def _support_gcn_kernel(x_ref, w_ref, s_ref, acc_ref, *, tk, w_resident):
    k = pl.program_id(1)

    @pl.when(k == 0)
    def _init():
        acc_ref[...] = jnp.zeros_like(acc_ref)

    if w_resident:
        off = pl.multiple_of(k * tk, tk)
        w = w_ref[pl.ds(off, tk), :]
    else:
        w = w_ref[...]

    acc_ref[...] += jnp.dot(x_ref[...], w, preferred_element_type=jnp.float32)

    @pl.when(k == pl.num_programs(1) - 1)
    def _fin():
        s_ref[...] = acc_ref[...].astype(s_ref.dtype)


def _support_noise_kernel(rb_ref, x_ref, noise_ref, w_ref, s_ref, acc_ref, *,
                          tk, w_resident):
    k = pl.program_id(1)

    @pl.when(k == 0)
    def _init():
        acc_ref[...] = jnp.zeros_like(acc_ref)

    rb = rb_ref[0]                               # scalar from SMEM prefetch
    xn = x_ref[...] + rb * noise_ref[...]        # whole chain kept in f32

    if w_resident:
        off = pl.multiple_of(k * tk, tk)
        w = w_ref[pl.ds(off, tk), :]
    else:
        w = w_ref[...]

    acc_ref[...] += jnp.dot(xn, w, preferred_element_type=jnp.float32)

    @pl.when(k == pl.num_programs(1) - 1)
    def _fin():
        s_ref[...] = acc_ref[...].astype(s_ref.dtype)


# ---------------------------------------------------------------------------
# Phase 2 kernel: output = adj @ support + bias
#   adj streamed raw (no wrapper pad/copy); ragged tail masked in-kernel,
#   only in the last reduction step.  support optionally VMEM-resident.
# ---------------------------------------------------------------------------
def _aggregate_kernel(adj_ref, s_ref, b_ref, o_ref, acc_ref, *,
                      n_valid, tnode, ragged, s_resident):
    k = pl.program_id(1)
    nk = pl.num_programs(1)

    @pl.when(k == 0)
    def _init():
        acc_ref[...] = jnp.zeros_like(acc_ref)

    if s_resident:
        off = pl.multiple_of(k * tnode, tnode)
        s = s_ref[pl.ds(off, tnode), :]
    else:
        s = s_ref[...]

    def _accum(mask_tail_cols):
        a = adj_ref[...]
        if mask_tail_cols:
            # Zero the out-of-bounds (garbage) adj columns of the tail block.
            col = k * tnode + jax.lax.broadcasted_iota(jnp.int32, a.shape, 1)
            a = jnp.where(col < n_valid, a, jnp.zeros_like(a))
        acc_ref[...] += jnp.dot(a.astype(s.dtype), s,
                                preferred_element_type=jnp.float32)

    if ragged:
        @pl.when(k < nk - 1)
        def _main():
            _accum(False)

        @pl.when(k == nk - 1)
        def _tail():
            _accum(True)
    else:
        _accum(False)

    @pl.when(k == nk - 1)
    def _fin():
        o_ref[...] = (acc_ref[...] + b_ref[...].astype(jnp.float32)
                      ).astype(o_ref.dtype)


# ---------------------------------------------------------------------------
# Wrapper
# ---------------------------------------------------------------------------
@functools.partial(jax.jit,
                   static_argnames=("func", "compute_dtype", "out_dtype"))
def gg_forward(x, adj, weight, random_base, bias=None, func="GCN", noise=None,
               compute_dtype=jnp.bfloat16, out_dtype=None):
    """Mirror of GG.forward(input, adj, my_adj) (my_adj is unused upstream)."""
    n, f_in = x.shape
    f_out = weight.shape[1]
    assert adj.shape == (n, n), adj.shape

    if func not in ("GCN", "rand", "randn"):
        # The module's else branch (adj.support) is an upstream bug; reject.
        raise ValueError(f"unsupported func: {func!r}")

    noisy = func in ("rand", "randn")
    if noisy and noise is None:
        # TODO(synk): generate noise in-kernel (pltpu.prng_seed +
        # pltpu.stateful_normal/stateful_uniform) to drop this HBM stream.
        raise ValueError("rand/randn paths require a noise array")

    out_dt = jnp.dtype(out_dtype) if out_dtype is not None else x.dtype
    # rand/randn: keep x / noise / support in f32 so the ~1e-3-relative noise
    # perturbation survives (bf16 would round it away).  adj stays whatever
    # the caller provides; the kernel casts per-tile.
    p1_dt = jnp.float32 if noisy else jnp.dtype(compute_dtype)
    s_dt = p1_dt

    # ---- tile sizes / padded shapes (adj itself is never padded) ----------
    tnode = _pick_node_tile(n)                 # node-axis tile, both phases
    np_s = _round_up(n, tnode)                 # padded rows for x / support
    tk1 = min(512, _round_up(f_in, LANE))      # phase-1 reduction tile
    fi_p = _round_up(f_in, tk1)
    fo_p = _round_up(f_out, LANE)              # lane-dense full output width
    # TODO(synk): reintroduce an output-column grid axis for very large f_out.

    p1_isz = _itemsize(p1_dt)
    s_isz = _itemsize(s_dt)
    adj_isz = _itemsize(adj.dtype)
    out_isz = _itemsize(out_dt)

    # ---- small operands: pad/cast in the wrapper (cheap; adj untouched) ---
    x_p = jnp.zeros((np_s, fi_p), p1_dt).at[:n, :f_in].set(x.astype(p1_dt))
    w_p = jnp.zeros((fi_p, fo_p), p1_dt).at[:f_in, :f_out].set(
        weight.astype(p1_dt))
    if bias is None:
        b_p = jnp.zeros((1, fo_p), jnp.float32)
    else:
        b_p = jnp.zeros((1, fo_p), jnp.float32).at[0, :f_out].set(
            bias.astype(jnp.float32))

    # -------------------- Phase 1: support --------------------
    grid1 = (np_s // tnode, fi_p // tk1)
    w_resident = fi_p * fo_p * p1_isz <= W_RESIDENT_MAX
    w_block = (fi_p, fo_p) if w_resident else (tk1, fo_p)

    x_blk = tnode * tk1 * p1_isz
    need1 = (2 * x_blk + (2 * x_blk if noisy else 0)
             + 2 * (w_block[0] * w_block[1] * p1_isz)
             + 2 * tnode * fo_p * s_isz + tnode * fo_p * 4)
    cost1 = pl.CostEstimate(
        flops=2 * np_s * fi_p * fo_p,
        transcendentals=0,
        bytes_accessed=(np_s * fi_p * (2 if noisy else 1)
                        + fi_p * fo_p) * p1_isz + np_s * fo_p * s_isz,
    )

    if noisy:
        noise_p = jnp.zeros((np_s, fi_p), p1_dt).at[:n, :f_in].set(
            noise.astype(p1_dt))
        rb = random_base.astype(jnp.float32).reshape(1)
        w_map = ((lambda i, k, rb: (0, 0)) if w_resident
                 else (lambda i, k, rb: (k, 0)))
        support = pl.pallas_call(
            functools.partial(_support_noise_kernel, tk=tk1,
                              w_resident=w_resident),
            out_shape=jax.ShapeDtypeStruct((np_s, fo_p), s_dt),
            grid_spec=pltpu.PrefetchScalarGridSpec(
                num_scalar_prefetch=1,
                grid=grid1,
                in_specs=[
                    pl.BlockSpec((tnode, tk1), lambda i, k, rb: (i, k)),  # x
                    pl.BlockSpec((tnode, tk1), lambda i, k, rb: (i, k)),  # noise
                    pl.BlockSpec(w_block, w_map),                         # w
                ],
                out_specs=pl.BlockSpec((tnode, fo_p), lambda i, k, rb: (i, 0)),
                scratch_shapes=[pltpu.VMEM((tnode, fo_p), jnp.float32)],
            ),
            compiler_params=_compiler_params(_vmem_limit(need1)),
            cost_estimate=cost1,
        )(rb, x_p, noise_p, w_p)
    else:
        w_map = ((lambda i, k: (0, 0)) if w_resident
                 else (lambda i, k: (k, 0)))
        support = pl.pallas_call(
            functools.partial(_support_gcn_kernel, tk=tk1,
                              w_resident=w_resident),
            out_shape=jax.ShapeDtypeStruct((np_s, fo_p), s_dt),
            grid_spec=pltpu.PrefetchScalarGridSpec(
                num_scalar_prefetch=0,
                grid=grid1,
                in_specs=[
                    pl.BlockSpec((tnode, tk1), lambda i, k: (i, k)),  # x
                    pl.BlockSpec(w_block, w_map),                     # w
                ],
                out_specs=pl.BlockSpec((tnode, fo_p), lambda i, k: (i, 0)),
                scratch_shapes=[pltpu.VMEM((tnode, fo_p), jnp.float32)],
            ),
            compiler_params=_compiler_params(_vmem_limit(need1)),
            cost_estimate=cost1,
        )(x_p, w_p)

    # -------------------- Phase 2: adj @ support + bias --------------------
    grid2 = (pl.cdiv(n, tnode), pl.cdiv(n, tnode))
    ragged = (n % tnode) != 0
    s_resident = np_s * fo_p * s_isz <= S_RESIDENT_MAX
    if s_resident:
        s_spec = pl.BlockSpec((np_s, fo_p), lambda i, k: (0, 0))
        s_buf = np_s * fo_p * s_isz
    else:
        s_spec = pl.BlockSpec((tnode, fo_p), lambda i, k: (k, 0))
        s_buf = tnode * fo_p * s_isz

    need2 = (2 * tnode * tnode * adj_isz + 2 * s_buf
             + 2 * tnode * fo_p * out_isz + 2 * fo_p * 4 + tnode * fo_p * 4)
    cost2 = pl.CostEstimate(
        flops=2 * n * n * fo_p,
        transcendentals=0,
        bytes_accessed=n * n * adj_isz + np_s * fo_p * s_isz
                       + n * fo_p * out_isz + fo_p * 4,
    )

    # NOTE(v5e): pipeline_mode=pl.Buffered(3) on the adj BlockSpec can hide
    # more DMA latency on the bandwidth-limited generation; default
    # double-buffering is kept here for portability.
    out_p = pl.pallas_call(
        functools.partial(_aggregate_kernel, n_valid=n, tnode=tnode,
                          ragged=ragged, s_resident=s_resident),
        out_shape=jax.ShapeDtypeStruct((n, fo_p), out_dt),
        grid_spec=pltpu.PrefetchScalarGridSpec(
            num_scalar_prefetch=0,
            grid=grid2,
            in_specs=[
                pl.BlockSpec((tnode, tnode), lambda i, k: (i, k)),  # adj (raw)
                s_spec,                                             # support
                pl.BlockSpec((1, fo_p), lambda i, k: (0, 0)),       # bias
            ],
            out_specs=pl.BlockSpec((tnode, fo_p), lambda i, k: (i, 0)),
            scratch_shapes=[pltpu.VMEM((tnode, fo_p), jnp.float32)],
        ),
        compiler_params=_compiler_params(_vmem_limit(need2)),
        cost_estimate=cost2,
    )(adj, support, b_p)

    return out_p[:, :f_out]


def init_params(key, in_features, out_features):
    """Deterministic re-implementation of GG.reset_parameters()."""
    stdv = 1.0 / jnp.sqrt(jnp.float32(out_features))
    kw, kb = jax.random.split(key)
    weight = jax.random.uniform(
        kw, (in_features, out_features), jnp.float32, minval=-stdv, maxval=stdv)
    bias = jax.random.uniform(
        kb, (out_features,), jnp.float32, minval=-stdv, maxval=stdv)
    random_base = jnp.full((1,), 0.001, jnp.float32)  # uniform_(0.001, 0.001)
    return weight, random_base, bias


if __name__ == "__main__":
    key = jax.random.PRNGKey(0)
    k_x, k_adj, k_params, k_noise = jax.random.split(key, 4)

    # Small GCN-ish shapes that exercise multi-block grids and the ragged
    # (n % tile != 0) adj edge handling.
    n_nodes, in_features, out_features = 300, 160, 48

    x = jax.random.normal(k_x, (n_nodes, in_features), jnp.float32)
    a = jax.random.uniform(k_adj, (n_nodes, n_nodes), jnp.float32)
    adj = (a + a.T) / 2.0 + jnp.eye(n_nodes, dtype=jnp.float32)
    adj = adj / jnp.sum(adj, axis=1, keepdims=True)

    weight, random_base, bias = init_params(k_params, in_features, out_features)
    ref_gcn = adj @ (x @ weight) + bias

    # 1) GCN path, exact f32 compute (tight tolerance).
    out_f32 = gg_forward(x, adj, weight, random_base, bias, func="GCN",
                         compute_dtype=jnp.float32)
    out_f32 = jax.block_until_ready(out_f32)
    assert jnp.allclose(out_f32, ref_gcn, atol=1e-4, rtol=1e-4)

    # 2) GCN path, default bf16 MXU inputs (adj streamed raw f32, cast per-tile).
    out_bf16 = gg_forward(x, adj, weight, random_base, bias, func="GCN")
    out_bf16 = jax.block_until_ready(out_bf16)
    assert jnp.allclose(out_bf16, ref_gcn, atol=5e-2, rtol=5e-2)

    # 3) randn path: noise fused into phase 1; x/noise/support chain kept f32.
    noise = jax.random.normal(k_noise, x.shape, jnp.float32)
    out_randn = gg_forward(x, adj, weight, random_base, bias, func="randn",
                           noise=noise)
    out_randn = jax.block_until_ready(out_randn)
    ref_randn = adj @ ((x + random_base[0] * noise) @ weight) + bias
    assert jnp.allclose(out_randn, ref_randn, atol=1e-4, rtol=1e-4)

    print("KERNEL_OK")
</pallas_src>

<mosaic_0001>
module attributes {stable_mosaic.version = 11 : i64} {
  func.func @_support_gcn_kernel(%arg0: i32, %arg1: i32, %arg2: memref<128x256xf32, #tpu.memory_space<vmem>>, %arg3: memref<256x128xf32, #tpu.memory_space<vmem>>, %arg4: memref<128x128xf32, #tpu.memory_space<vmem>>, %arg5: memref<128x128xf32, #tpu.memory_space<vmem>>) attributes {dimension_semantics = [#tpu.dimension_semantics<parallel>, #tpu.dimension_semantics<arbitrary>], iteration_bounds = array<i64: 3, 1>, scalar_prefetch = 0 : i64, scratch_operands = 1 : i64, tpu.core_type = #tpu.core_type<tc>, window_params = [{transform_indices = @transform_0, window_bounds = array<i64: 128, 256>}, {pipeline_mode = #tpu.pipeline_mode<synchronous>, transform_indices = @transform_1, window_bounds = array<i64: 256, 128>}, {transform_indices = @transform_2, window_bounds = array<i64: 128, 128>}]} {
    %c0_i32 = arith.constant 0 : i32
    %0 = arith.cmpi eq, %arg1, %c0_i32 : i32
    %1 = arith.extui %0 : i1 to i32
    %c0_i32_0 = arith.constant 0 : i32
    %2 = arith.cmpi ne, %1, %c0_i32_0 : i32
    scf.if %2 {
      %cst_9 = arith.constant 0.000000e+00 : f32
      %15 = vector.broadcast %cst_9 : f32 to vector<128x128xf32>
      %c0_10 = arith.constant 0 : index
      %c0_11 = arith.constant 0 : index
      %16 = vector.load %arg5[%c0_10, %c0_11] : memref<128x128xf32, #tpu.memory_space<vmem>>, vector<128x128xf32>
      tpu.vector_store %arg5[%c0_10, %c0_11], %15 {strides = array<i32>} : memref<128x128xf32, #tpu.memory_space<vmem>>, vector<128x128xf32>,
    } else {
    }
    %c256_i32 = arith.constant 256 : i32
    %3 = arith.muli %arg1, %c256_i32 : i32
    %4 = tpu.assume_multiple %3, 256 : i32
    %5 = arith.index_cast %4 : i32 to index
    %c0 = arith.constant 0 : index
    %6 = vector.load %arg3[%5, %c0] : memref<256x128xf32, #tpu.memory_space<vmem>>, vector<256x128xf32>
    %c0_1 = arith.constant 0 : index
    %c0_2 = arith.constant 0 : index
    %7 = vector.load %arg5[%c0_1, %c0_2] : memref<128x128xf32, #tpu.memory_space<vmem>>, vector<128x128xf32>
    %c0_3 = arith.constant 0 : index
    %c0_4 = arith.constant 0 : index
    %8 = vector.load %arg2[%c0_3, %c0_4] : memref<128x256xf32, #tpu.memory_space<vmem>>, vector<128x256xf32>
    %cst = arith.constant dense<0.000000e+00> : vector<128x128xf32>
    %9 = tpu.matmul %8, %6, %cst {dimension_numbers = #tpu.dot_dimension_numbers<[1], [0], [0], [1], [0, 0, 1, 1], [], []>} : vector<128x256xf32>, vector<256x128xf32>, vector<128x128xf32> -> vector<128x128xf32>
    %10 = arith.addf %7, %9 : vector<128x128xf32>
    %c0_5 = arith.constant 0 : index
    %c0_6 = arith.constant 0 : index
    %11 = vector.load %arg5[%c0_5, %c0_6] : memref<128x128xf32, #tpu.memory_space<vmem>>, vector<128x128xf32>
    tpu.vector_store %arg5[%c0_5, %c0_6], %10 {strides = array<i32>} : memref<128x128xf32, #tpu.memory_space<vmem>>, vector<128x128xf32>,
    %c0_i32_7 = arith.constant 0 : i32
    %12 = arith.cmpi eq, %arg1, %c0_i32_7 : i32
    %13 = arith.extui %12 : i1 to i32
    %c0_i32_8 = arith.constant 0 : i32
    %14 = arith.cmpi ne, %13, %c0_i32_8 : i32
    scf.if %14 {
      %c0_9 = arith.constant 0 : index
      %c0_10 = arith.constant 0 : index
      %15 = vector.load %arg5[%c0_9, %c0_10] : memref<128x128xf32, #tpu.memory_space<vmem>>, vector<128x128xf32>
      %c0_11 = arith.constant 0 : index
      %c0_12 = arith.constant 0 : index
      %16 = vector.load %arg4[%c0_11, %c0_12] : memref<128x128xf32, #tpu.memory_space<vmem>>, vector<128x128xf32>
      tpu.vector_store %arg4[%c0_11, %c0_12], %15 {strides = array<i32>} : memref<128x128xf32, #tpu.memory_space<vmem>>, vector<128x128xf32>,
    } else {
    }
    return
  }
  func.func @transform_0(%arg0: i32, %arg1: i32) -> (i32, i32) {
    %c0_i32 = arith.constant 0 : i32
    return %arg0, %arg1 : i32, i32
  }
  func.func @transform_1(%arg0: i32, %arg1: i32) -> (i32, i32) {
    %c0_i32 = arith.constant 0 : i32
    %c0_i32_0 = arith.constant 0 : i32
    %c0_i32_1 = arith.constant 0 : i32
    return %c0_i32, %c0_i32_0 : i32, i32
  }
  func.func @transform_2(%arg0: i32, %arg1: i32) -> (i32, i32) {
    %c0_i32 = arith.constant 0 : i32
    %c0_i32_0 = arith.constant 0 : i32
    return %arg0, %c0_i32 : i32, i32
  }
}

module attributes {stable_mosaic.version = 11 : i64} {
  func.func @_aggregate_kernel(%arg0: i32, %arg1: i32, %arg2: memref<128x128xf32, #tpu.memory_space<vmem>>, %arg3: memref<384x128xf32, #tpu.memory_space<vmem>>, %arg4: memref<1x128xf32, #tpu.memory_space<vmem>>, %arg5: memref<128x128xf32, #tpu.memory_space<vmem>>, %arg6: memref<128x128xf32, #tpu.memory_space<vmem>>) attributes {dimension_semantics = [#tpu.dimension_semantics<parallel>, #tpu.dimension_semantics<arbitrary>], iteration_bounds = array<i64: 3, 3>, scalar_prefetch = 0 : i64, scratch_operands = 1 : i64, tpu.core_type = #tpu.core_type<tc>, window_params = [{transform_indices = @transform_0, window_bounds = array<i64: 128, 128>}, {pipeline_mode = #tpu.pipeline_mode<synchronous>, transform_indices = @transform_1, window_bounds = array<i64: 384, 128>}, {pipeline_mode = #tpu.pipeline_mode<synchronous>, transform_indices = @transform_2, window_bounds = array<i64: 1, 128>}, {transform_indices = @transform_3, window_bounds = array<i64: 128, 128>}]} {
    %c0_i32 = arith.constant 0 : i32
    %0 = arith.cmpi eq, %arg1, %c0_i32 : i32
    %1 = arith.extui %0 : i1 to i32
    %c0_i32_0 = arith.constant 0 : i32
    %2 = arith.cmpi ne, %1, %c0_i32_0 : i32
    scf.if %2 {
      %cst = arith.constant 0.000000e+00 : f32
      %16 = vector.broadcast %cst : f32 to vector<128x128xf32>
      %c0_6 = arith.constant 0 : index
      %c0_7 = arith.constant 0 : index
      %17 = vector.load %arg6[%c0_6, %c0_7] : memref<128x128xf32, #tpu.memory_space<vmem>>, vector<128x128xf32>
      tpu.vector_store %arg6[%c0_6, %c0_7], %16 {strides = array<i32>} : memref<128x128xf32, #tpu.memory_space<vmem>>, vector<128x128xf32>,
    } else {
    }
    %c128_i32 = arith.constant 128 : i32
    %3 = arith.muli %arg1, %c128_i32 : i32
    %4 = tpu.assume_multiple %3, 128 : i32
    %5 = arith.index_cast %4 : i32 to index
    %c0 = arith.constant 0 : index
    %6 = vector.load %arg3[%5, %c0] : memref<384x128xf32, #tpu.memory_space<vmem>>, vector<128x128xf32>
    %c2_i32 = arith.constant 2 : i32
    %7 = arith.cmpi slt, %arg1, %c2_i32 : i32
    %8 = arith.extui %7 : i1 to i32
    %c0_i32_1 = arith.constant 0 : i32
    %9 = arith.cmpi ne, %8, %c0_i32_1 : i32
    scf.if %9 {
      %c0_6 = arith.constant 0 : index
      %c0_7 = arith.constant 0 : index
      %16 = vector.load %arg2[%c0_6, %c0_7] : memref<128x128xf32, #tpu.memory_space<vmem>>, vector<128x128xf32>
      %c0_8 = arith.constant 0 : index
      %c0_9 = arith.constant 0 : index
      %17 = vector.load %arg6[%c0_8, %c0_9] : memref<128x128xf32, #tpu.memory_space<vmem>>, vector<128x128xf32>
      %cst = arith.constant dense<0.000000e+00> : vector<128x128xf32>
      %18 = tpu.matmul %16, %6, %cst {dimension_numbers = #tpu.dot_dimension_numbers<[1], [0], [0], [1], [0, 0, 1, 1], [], []>} : vector<128x128xf32>, vector<128x128xf32>, vector<128x128xf32> -> vector<128x128xf32>
      %19 = arith.addf %17, %18 : vector<128x128xf32>
      %c0_10 = arith.constant 0 : index
      %c0_11 = arith.constant 0 : index
      %20 = vector.load %arg6[%c0_10, %c0_11] : memref<128x128xf32, #tpu.memory_space<vmem>>, vector<128x128xf32>
      tpu.vector_store %arg6[%c0_10, %c0_11], %19 {strides = array<i32>} : memref<128x128xf32, #tpu.memory_space<vmem>>, vector<128x128xf32>,
    } else {
    }
    %c2_i32_2 = arith.constant 2 : i32
    %10 = arith.cmpi eq, %arg1, %c2_i32_2 : i32
    %11 = arith.extui %10 : i1 to i32
    %c0_i32_3 = arith.constant 0 : i32
    %12 = arith.cmpi ne, %11, %c0_i32_3 : i32
    scf.if %12 {
      %c0_6 = arith.constant 0 : index
      %c0_7 = arith.constant 0 : index
      %16 = vector.load %arg2[%c0_6, %c0_7] : memref<128x128xf32, #tpu.memory_space<vmem>>, vector<128x128xf32>
      %c128_i32_8 = arith.constant 128 : i32
      %17 = arith.muli %arg1, %c128_i32_8 : i32
      %18 = tpu.iota {dimensions = array<i32: 1>} : vector<128x128xi32>
      %19 = vector.broadcast %17 : i32 to vector<128x128xi32>
      %20 = arith.addi %19, %18 : vector<128x128xi32>
      %c300_i32 = arith.constant 300 : i32
      %21 = vector.broadcast %c300_i32 : i32 to vector<128x128xi32>
      %22 = arith.cmpi slt, %20, %21 : vector<128x128xi32>
      %cst = arith.constant 0.000000e+00 : f32
      %23 = vector.broadcast %cst : f32 to vector<128x128xf32>
      %24 = arith.select %22, %16, %23 : vector<128x128xi1>, vector<128x128xf32>
      %c0_9 = arith.constant 0 : index
      %c0_10 = arith.constant 0 : index
      %25 = vector.load %arg6[%c0_9, %c0_10] : memref<128x128xf32, #tpu.memory_space<vmem>>, vector<128x128xf32>
      %cst_11 = arith.constant dense<0.000000e+00> : vector<128x128xf32>
      %26 = tpu.matmul %24, %6, %cst_11 {dimension_numbers = #tpu.dot_dimension_numbers<[1], [0], [0], [1], [0, 0, 1, 1], [], []>} : vector<128x128xf32>, vector<128x128xf32>, vector<128x128xf32> -> vector<128x128xf32>
      %27 = arith.addf %25, %26 : vector<128x128xf32>
      %c0_12 = arith.constant 0 : index
      %c0_13 = arith.constant 0 : index
      %28 = vector.load %arg6[%c0_12, %c0_13] : memref<128x128xf32, #tpu.memory_space<vmem>>, vector<128x128xf32>
      tpu.vector_store %arg6[%c0_12, %c0_13], %27 {strides = array<i32>} : memref<128x128xf32, #tpu.memory_space<vmem>>, vector<128x128xf32>,
    } else {
    }
    %c2_i32_4 = arith.constant 2 : i32
    %13 = arith.cmpi eq, %arg1, %c2_i32_4 : i32
    %14 = arith.extui %13 : i1 to i32
    %c0_i32_5 = arith.constant 0 : i32
    %15 = arith.cmpi ne, %14, %c0_i32_5 : i32
    scf.if %15 {
      %c0_6 = arith.constant 0 : index
      %c0_7 = arith.constant 0 : index
      %16 = vector.load %arg6[%c0_6, %c0_7] : memref<128x128xf32, #tpu.memory_space<vmem>>, vector<128x128xf32>
      %c0_8 = arith.constant 0 : index
      %c0_9 = arith.constant 0 : index
      %17 = vector.load %arg4[%c0_8, %c0_9] : memref<1x128xf32, #tpu.memory_space<vmem>>, vector<1x128xf32>
      %18 = vector.broadcast %17 : vector<1x128xf32> to vector<128x128xf32>
      %19 = arith.addf %16, %18 : vector<128x128xf32>
      %c0_10 = arith.constant 0 : index
      %c0_11 = arith.constant 0 : index
      %20 = vector.load %arg5[%c0_10, %c0_11] : memref<128x128xf32, #tpu.memory_space<vmem>>, vector<128x128xf32>
      tpu.vector_store %arg5[%c0_10, %c0_11], %19 {strides = array<i32>} : memref<128x128xf32, #tpu.memory_space<vmem>>, vector<128x128xf32>,
    } else {
    }
    return
  }
  func.func @transform_0(%arg0: i32, %arg1: i32) -> (i32, i32) {
    %c0_i32 = arith.constant 0 : i32
    return %arg0, %arg1 : i32, i32
  }
  func.func @transform_1(%arg0: i32, %arg1: i32) -> (i32, i32) {
    %c0_i32 = arith.constant 0 : i32
    %c0_i32_0 = arith.constant 0 : i32
    %c0_i32_1 = arith.constant 0 : i32
    return %c0_i32, %c0_i32_0 : i32, i32
  }
  func.func @transform_2(%arg0: i32, %arg1: i32) -> (i32, i32) {
    %c0_i32 = arith.constant 0 : i32
    %c0_i32_0 = arith.constant 0 : i32
    %c0_i32_1 = arith.constant 0 : i32
    return %c0_i32, %c0_i32_0 : i32, i32
  }
  func.func @transform_3(%arg0: i32, %arg1: i32) -> (i32, i32) {
    %c0_i32 = arith.constant 0 : i32
    %c0_i32_0 = arith.constant 0 : i32
    return %arg0, %c0_i32 : i32, i32
  }
}

</mosaic_0001>

<llo_original>
// kernel: gg_forward.2
$region0: #{gg_forward.2}
  #allocation0 [shape = 'u32[]', space=smem, size = 0x4, offset = 0x4, fixed_abs, tag = 'smem constant byte address 0x4 - core index']
  #allocation1 [shape = 'u32[144,128]{1,0:T(1,128)}', space=vmem, size = 0x12000, scoped, tag = 'internal scratch']
  #allocation2 [shape = 'f32[128,128]{1,0:T(8,128)}', space=vmem, size = 0x10000, scoped, tag = 'scratch operand']
  %s0 = inlined_call_operand.vmem [shape: f32[384,256], index: 0, kind: input, shape index: {}]
  %s1 = inlined_call_operand.vmem [shape: f32[256,128], index: 1, kind: input, shape index: {}]
  %s2 = inlined_call_operand.vmem [shape: f32[384,128], index: 2, kind: output, shape index: {}]
  %s3 = sld [smem:[#allocation0]]
  $region49: #{gg_forward.2} parent=0
    _
  %s5 = ssub.s32 1, %s3
  %s6 = scalar_select 0, %s5, %s3
  loop: start=0, step=1, limit=5
  $region2: #{gg_forward.2} parent=0 // loop_pre_header
    _
  $region3: #{gg_forward.2} parent=0 // loop_header
    %s8 = sphi 0, %s12
    %p9 = scmp.ge.s32.totalorder %s8, 5
    %s15 = sphi 0, %s27
    %s16 = sphi 0, %s23
    %s17 = sphi 0, %s15
    %s18 = sphi 0, %s16
    %s19 = sphi 0, %s17
    %s20 = sphi 0, %s18
    %s32 = sphi 0, %s34
    %s35 = sphi 0, %s32
    %s36 = sphi 0, %s35
    %s52 = sphi 0, %s36
    %s56 = sphi 0, %s56
    %s58 = sphi 0, %s56
    %s59 = sphi 0, %s58
    %s73 = sphi 0, %s59
    %s79 = sphi 0, %s81
    %s82 = sphi 0, %s79
    %s83 = sphi 0, %s82
    %s99 = sphi 0, %s83
  $region4: #{gg_forward.2} parent=0 // loop_header_branch
    %11 = sbr.rel (%p9) target = $region8
  $region5: #{gg_forward.2} parent=0 // loop_body
    %s13 = ssub.s32 %s8, 1
    %s14 = ssub.s32 %s8, 2
    %s21 = sadd.s32 1, %s16
    %p22 = scmp.ge.s32.totalorder %s21, 1
    %s23 = scalar_select %p22, 0, %s21
    %s24 = sadd.s32 1, %s15
    %s25 = scalar_select %p22, %s24, %s15
    %p26 = scmp.ge.s32.totalorder %s25, 3
    %s27 = scalar_select %p26, 0, %s25
    %s28 = ssub.s32 %s15, %s27
    %s29 = ssub.s32 %s16, %s23
    %s30 = sor.u32 %s28, %s29
    %p31 = scmp.eq.s32.totalorder %s30, 0
    %s33 = sadd.s32 %s32, 1
    %s34 = scalar_select %p31, %s32, %s33
    %p37 = pneg %p31
    %p38 = scmp.eq.s32.totalorder %s8, 2
    %p39 = por %p37, %p38
    %p40 = scmp.ne.s32.totalorder %s32, %s35
    %p41 = scmp.eq.s32.totalorder %s8, 0
    %p42 = por %p40, %p41
    %p43 = scmp.ne.s32.totalorder %s32, %s35
    %p44 = scmp.eq.s32.totalorder %s13, 2
    %p45 = por %p43, %p44
    %p46 = scmp.ne.s32.totalorder %s35, %s36
    %p47 = scmp.eq.s32.totalorder %s13, 0
    %p48 = por %p46, %p47
    %p49 = scmp.ne.s32.totalorder %s35, %s36
    %p50 = scmp.eq.s32.totalorder %s14, 2
    %p51 = por %p49, %p50
    %p53 = scmp.ne.s32.totalorder %s36, %s52
    %p54 = scmp.eq.s32.totalorder %s14, 0
    %p55 = por %p53, %p54
    %s57 = sadd.s32 %s56, 1
    %p60 = scmp.eq.s32.totalorder %s8, 2
    %p61 = scmp.ne.s32.totalorder %s56, %s58
    %p62 = scmp.eq.s32.totalorder %s8, 0
    %p63 = por %p61, %p62
    %p64 = scmp.ne.s32.totalorder %s56, %s58
    %p65 = scmp.eq.s32.totalorder %s13, 2
    %p66 = por %p64, %p65
    %p67 = scmp.ne.s32.totalorder %s58, %s59
    %p68 = scmp.eq.s32.totalorder %s13, 0
    %p69 = por %p67, %p68
    %p70 = scmp.ne.s32.totalorder %s58, %s59
    %p71 = scmp.eq.s32.totalorder %s14, 2
    %p72 = por %p70, %p71
    %p74 = scmp.ne.s32.totalorder %s59, %s73
    %p75 = scmp.eq.s32.totalorder %s14, 0
    %p76 = por %p74, %p75
    %s77 = ssub.s32 %s15, %s27
    %p78 = scmp.eq.s32.totalorder %s77, 0
    %s80 = sadd.s32 %s79, 1
    %s81 = scalar_select %p78, %s79, %s80
    %p84 = pneg %p78
    %p85 = scmp.eq.s32.totalorder %s8, 2
    %p86 = por %p84, %p85
    %p87 = scmp.ne.s32.totalorder %s79, %s82
    %p88 = scmp.eq.s32.totalorder %s8, 0
    %p89 = por %p87, %p88
    %p90 = scmp.ne.s32.totalorder %s79, %s82
    %p91 = scmp.eq.s32.totalorder %s13, 2
    %p92 = por %p90, %p91
    %p93 = scmp.ne.s32.totalorder %s82, %s83
    %p94 = scmp.eq.s32.totalorder %s13, 0
    %p95 = por %p93, %p94
    %p96 = scmp.ne.s32.totalorder %s82, %s83
    %p97 = scmp.eq.s32.totalorder %s14, 2
    %p98 = por %p96, %p97
    %p100 = scmp.ne.s32.totalorder %s83, %s99
    %p101 = scmp.eq.s32.totalorder %s14, 0
    %p102 = por %p100, %p101
    %p103 = scmp.le.s32.totalorder 1, %s8
    %p104 = scmp.lt.s32.totalorder %s8, 4
    %p105 = pnand %p103, %p104
    %p106 = pneg %p105
    // Predicated region
    $region9: #{gg_forward.2} parent=5 // pred_check
      _
    $region10: #{gg_forward.2} parent=5 // pred_check_branch
      %108 = sbr.rel (%p105) target = $region12
    $region11: #{gg_forward.2} parent=5 // pred_region
      %s109 = ssub.s32 %s8, 1
      // Predicated region
      $region13: #{gg_forward.2} parent=11 // pred_check
        %p110 = pneg %p69
      $region14: #{gg_forward.2} parent=11 // pred_check_branch
        %112 = sbr.rel (%p110) target = $region16
      $region15: #{gg_forward.2} parent=11 // pred_region
        _
      $region16: #{gg_forward.2} parent=11 // pred_fallthru
        _
    $region12: #{gg_forward.2} parent=5 // pred_fallthru
      _
    %p113 = scmp.lt.s32.totalorder %s8, 3
    // Predicated region
    $region17: #{gg_forward.2} parent=5 // pred_check
      %p114 = pneg %p113
    $region18: #{gg_forward.2} parent=5 // pred_check_branch
      %116 = sbr.rel (%p114) target = $region20
    $region19: #{gg_forward.2} parent=5 // pred_region
      // Predicated region
      $region21: #{gg_forward.2} parent=19 // pred_check
        %p117 = pneg %p42
      $region22: #{gg_forward.2} parent=19 // pred_check_branch
        %119 = sbr.rel (%p117) target = $region24
      $region23: #{gg_forward.2} parent=19 // pred_region
        %s120 = smul.u32 16, %s15
        %s121 = smul.u32 2, %s16
        %p122 = scmp.lt.s32.totalorder %s120, 47
        %s123 = scalar_select %p122, %s120, 47
        %p124 = scmp.lt.s32.totalorder %s121, 1
        %s125 = scalar_select %p124, %s121, 1
        %s126 = smul.addr %s123, 2
        %s127 = sadd.s32 %s125, %s126
        %s128 = smul.addr %s127, 8
        %s129 = scalar_lea.vmem %s0, %s128
        %s130 = smul.u32 16, %s15
        %s131 = smul.u32 2, %s16
      $region24: #{gg_forward.2} parent=19 // pred_fallthru
        _
    $region20: #{gg_forward.2} parent=5 // pred_fallthru
      _
    %p132 = scmp.le.s32.totalorder 1, %s8
    %p133 = scmp.lt.s32.totalorder %s8, 4
    %p134 = pnand %p132, %p133
    %p135 = pneg %p134
    // Predicated region
    $region25: #{gg_forward.2} parent=5 // pred_check
      _
    $region26: #{gg_forward.2} parent=5 // pred_check_branch
      %137 = sbr.rel (%p134) target = $region28
    $region27: #{gg_forward.2} parent=5 // pred_region
      %s138 = ssub.s32 %s8, 1
      %s139 = smul.u32 16, %s17
      %s140 = smul.u32 2, %s18
      %p141 = scmp.lt.s32.totalorder %s139, 47
      %s142 = scalar_select %p141, %s139, 47
      %p143 = scmp.lt.s32.totalorder %s140, 1
      %s144 = scalar_select %p143, %s140, 1
      %s145 = smul.addr %s142, 2
      %s146 = sadd.s32 %s144, %s145
      %s147 = smul.addr %s146, 8
      %s148 = scalar_lea.vmem %s0, %s147
      %p149 = pneg %p48
      %p150 = pneg %p45
      %p151 = pneg %p69
      %p152 = pneg %p66
      %p153 = pneg %p95
      %p154 = pneg %p92
      %s155 = smul.u32 16, %s17
      %p156 = scmp.lt.s32.totalorder %s155, 47
      %s157 = scalar_select %p156, %s155, 47
      %s158 = smul.addr %s157, 8
      %s159 = scalar_lea.vmem %s2, %s158
      %s160 = smul.u32 16, %s17
      %s161 = smul.u32 2, %s18
      %p162 = scmp.lt.s32.totalorder %s160, 47
      %s163 = scalar_select %p162, %s160, 47
      %p164 = scmp.lt.s32.totalorder %s161, 1
      %s165 = scalar_select %p164, %s161, 1
      %s166 = smul.addr %s163, 2
      %s167 = sadd.s32 %s165, %s166
      %s168 = smul.addr %s167, 8
      %s169 = scalar_lea.vmem %s0, %s168
      %s170 = smul.u32 16, %s17
      %s171 = smul.u32 2, %s18
      %s172 = smul.u32 16, %s17
      %p173 = scmp.lt.s32.totalorder %s172, 47
      %s174 = scalar_select %p173, %s172, 47
      %s175 = smul.addr %s174, 8
      %s176 = scalar_lea.vmem %s2, %s175
      %s177 = smul.u32 16, %s17
      %p178 = scmp.eq.s32.totalorder %s18, 0
      // Predicated region
      $region29: #{gg_forward.2} parent=27 // pred_check
        %p179 = pneg %p178
      $region30: #{gg_forward.2} parent=27 // pred_check_branch
        %181 = sbr.rel (%p179) target = $region32
      $region31: #{gg_forward.2} parent=27 // pred_region
        %182 = vst [vmem:[#allocation2] sm:$0xff] 0.0
        %183 = vst [vmem:[#allocation2 + $0x8] sm:$0xff] 0.0
        %184 = vst [vmem:[#allocation2 + $0x10] sm:$0xff] 0.0
        %185 = vst [vmem:[#allocation2 + $0x18] sm:$0xff] 0.0
        %186 = vst [vmem:[#allocation2 + $0x20] sm:$0xff] 0.0
        %187 = vst [vmem:[#allocation2 + $0x28] sm:$0xff] 0.0
        %188 = vst [vmem:[#allocation2 + $0x30] sm:$0xff] 0.0
        %189 = vst [vmem:[#allocation2 + $0x38] sm:$0xff] 0.0
        %190 = vst [vmem:[#allocation2 + $0x40] sm:$0xff] 0.0
        %191 = vst [vmem:[#allocation2 + $0x48] sm:$0xff] 0.0
        %192 = vst [vmem:[#allocation2 + $0x50] sm:$0xff] 0.0
        %193 = vst [vmem:[#allocation2 + $0x58] sm:$0xff] 0.0
        %194 = vst [vmem:[#allocation2 + $0x60] sm:$0xff] 0.0
        %195 = vst [vmem:[#allocation2 + $0x68] sm:$0xff] 0.0
        %196 = vst [vmem:[#allocation2 + $0x70] sm:$0xff] 0.0
        %197 = vst [vmem:[#allocation2 + $0x78] sm:$0xff] 0.0
      $region32: #{gg_forward.2} parent=27 // pred_fallthru
        _
      %s198 = smul.u32 %s18, 256
      %s199 = scalar_lea.vmem %s1, %s198
      %v200 = vld [vmem:[%s199] sm:$0xff]
      %v201 = vld [vmem:[%s199 + $0x8] sm:$0xff]
      %v202 = vld [vmem:[%s199 + $0x10] sm:$0xff]
      %v203 = vld [vmem:[%s199 + $0x18] sm:$0xff]
      %v204 = vld [vmem:[%s199 + $0x20] sm:$0xff]
      %v205 = vld [vmem:[%s199 + $0x28] sm:$0xff]
      %v206 = vld [vmem:[%s199 + $0x30] sm:$0xff]
      %v207 = vld [vmem:[%s199 + $0x38] sm:$0xff]
      %v208 = vld [vmem:[%s199 + $0x40] sm:$0xff]
      %v209 = vld [vmem:[%s199 + $0x48] sm:$0xff]
      %v210 = vld [vmem:[%s199 + $0x50] sm:$0xff]
      %v211 = vld [vmem:[%s199 + $0x58] sm:$0xff]
      %v212 = vld [vmem:[%s199 + $0x60] sm:$0xff]
      %v213 = vld [vmem:[%s199 + $0x68] sm:$0xff]
      %v214 = vld [vmem:[%s199 + $0x70] sm:$0xff]
      %v215 = vld [vmem:[%s199 + $0x78] sm:$0xff]
      %v216 = vld [vmem:[%s199 + $0x80] sm:$0xff]
      %v217 = vld [vmem:[%s199 + $0x88] sm:$0xff]
      %v218 = vld [vmem:[%s199 + $0x90] sm:$0xff]
      %v219 = vld [vmem:[%s199 + $0x98] sm:$0xff]
      %v220 = vld [vmem:[%s199 + $0xa0] sm:$0xff]
      %v221 = vld [vmem:[%s199 + $0xa8] sm:$0xff]
      %v222 = vld [vmem:[%s199 + $0xb0] sm:$0xff]
      %v223 = vld [vmem:[%s199 + $0xb8] sm:$0xff]
      %v224 = vld [vmem:[%s199 + $0xc0] sm:$0xff]
      %v225 = vld [vmem:[%s199 + $0xc8] sm:$0xff]
      %v226 = vld [vmem:[%s199 + $0xd0] sm:$0xff]
      %v227 = vld [vmem:[%s199 + $0xd8] sm:$0xff]
      %v228 = vld [vmem:[%s199 + $0xe0] sm:$0xff]
      %v229 = vld [vmem:[%s199 + $0xe8] sm:$0xff]
      %v230 = vld [vmem:[%s199 + $0xf0] sm:$0xff]
      %v231 = vld [vmem:[%s199 + $0xf8] sm:$0xff]
      %v232 = vld [vmem:[#allocation2] sm:$0xff]
      %v233 = vld [vmem:[#allocation2 + $0x8] sm:$0xff]
      %v234 = vld [vmem:[#allocation2 + $0x10] sm:$0xff]
      %v235 = vld [vmem:[#allocation2 + $0x18] sm:$0xff]
      %v236 = vld [vmem:[#allocation2 + $0x20] sm:$0xff]
      %v237 = vld [vmem:[#allocation2 + $0x28] sm:$0xff]
      %v238 = vld [vmem:[#allocation2 + $0x30] sm:$0xff]
      %v239 = vld [vmem:[#allocation2 + $0x38] sm:$0xff]
      %v240 = vld [vmem:[#allocation2 + $0x40] sm:$0xff]
      %v241 = vld [vmem:[#allocation2 + $0x48] sm:$0xff]
      %v242 = vld [vmem:[#allocation2 + $0x50] sm:$0xff]
      %v243 = vld [vmem:[#allocation2 + $0x58] sm:$0xff]
      %v244 = vld [vmem:[#allocation2 + $0x60] sm:$0xff]
      %v245 = vld [vmem:[#allocation2 + $0x68] sm:$0xff]
      %v246 = vld [vmem:[#allocation2 + $0x70] sm:$0xff]
      %v247 = vld [vmem:[#allocation2 + $0x78] sm:$0xff]
      %v248 = vld [vmem:[%s169] sm:$0xff]
      %v249 = vld [vmem:[%s169 + $0x8] sm:$0xff]
      %v250 = vld [vmem:[%s169 + $0x10] sm:$0xff]
      %v251 = vld [vmem:[%s169 + $0x18] sm:$0xff]
      %v252 = vld [vmem:[%s169 + $0x20] sm:$0xff]
      %v253 = vld [vmem:[%s169 + $0x28] sm:$0xff]
      %v254 = vld [vmem:[%s169 + $0x30] sm:$0xff]
      %v255 = vld [vmem:[%s169 + $0x38] sm:$0xff]
      %v256 = vld [vmem:[%s169 + $0x40] sm:$0xff]
      %v257 = vld [vmem:[%s169 + $0x48] sm:$0xff]
      %v258 = vld [vmem:[%s169 + $0x50] sm:$0xff]
      %v259 = vld [vmem:[%s169 + $0x58] sm:$0xff]
      %v260 = vld [vmem:[%s169 + $0x60] sm:$0xff]
      %v261 = vld [vmem:[%s169 + $0x68] sm:$0xff]
      %v262 = vld [vmem:[%s169 + $0x70] sm:$0xff]
      %v263 = vld [vmem:[%s169 + $0x78] sm:$0xff]
      %v264 = vld [vmem:[%s169 + $0x80] sm:$0xff]
      %v265 = vld [vmem:[%s169 + $0x88] sm:$0xff]
      %v266 = vld [vmem:[%s169 + $0x90] sm:$0xff]
      %v267 = vld [vmem:[%s169 + $0x98] sm:$0xff]
      %v268 = vld [vmem:[%s169 + $0xa0] sm:$0xff]
      %v269 = vld [vmem:[%s169 + $0xa8] sm:$0xff]
      %v270 = vld [vmem:[%s169 + $0xb0] sm:$0xff]
      %v271 = vld [vmem:[%s169 + $0xb8] sm:$0xff]
      %v272 = vld [vmem:[%s169 + $0xc0] sm:$0xff]
      %v273 = vld [vmem:[%s169 + $0xc8] sm:$0xff]
      %v274 = vld [vmem:[%s169 + $0xd0] sm:$0xff]
      %v275 = vld [vmem:[%s169 + $0xd8] sm:$0xff]
      %v276 = vld [vmem:[%s169 + $0xe0] sm:$0xff]
      %v277 = vld [vmem:[%s169 + $0xe8] sm:$0xff]
      %v278 = vld [vmem:[%s169 + $0xf0] sm:$0xff]
      %v279 = vld [vmem:[%s169 + $0xf8] sm:$0xff]
      %280 = vmatprep.subr.mxu0 0.0
      %281 = vmatpush1.msra.mxu0 %v215
      %282 = vmatprep.subr.mxu0 0.0
      %283 = vmatpush1.msra.mxu0 %v214
      %284 = vmatprep.subr.mxu0 0.0
      %285 = vmatpush1.msra.mxu0 %v213
      %286 = vmatprep.subr.mxu0 0.0
      %287 = vmatpush1.msra.mxu0 %v212
      %288 = vmatprep.subr.mxu0 0.0
      %289 = vmatpush1.msra.mxu0 %v211
      %290 = vmatprep.subr.mxu0 0.0
      %291 = vmatpush1.msra.mxu0 %v210
      %292 = vmatprep.subr.mxu0 0.0
      %293 = vmatpush1.msra.mxu0 %v209
      %294 = vmatprep.subr.mxu0 0.0
      %295 = vmatpush1.msra.mxu0 %v208
      %296 = vmatprep.subr.mxu0 0.0
      %297 = vmatpush1.msra.mxu0 %v207
      %298 = vmatprep.subr.mxu0 0.0
      %299 = vmatpush1.msra.mxu0 %v206
      %300 = vmatprep.subr.mxu0 0.0
      %301 = vmatpush1.msra.mxu0 %v205
      %302 = vmatprep.subr.mxu0 0.0
      %303 = vmatpush1.msra.mxu0 %v204
      %304 = vmatprep.subr.mxu0 0.0
      %305 = vmatpush1.msra.mxu0 %v203
      %306 = vmatprep.subr.mxu0 0.0
      %307 = vmatpush1.msra.mxu0 %v202
      %308 = vmatprep.subr.mxu0 0.0
      %309 = vmatpush1.msra.mxu0 %v201
      %310 = vmatprep.subr.mxu0 0.0
      %311 = vmatpush1.msra.mxu0 %v200
      %312 = vmatprep.subr.mxu0 0.0
      %313 = vmatpush2.msra.mxu0 %v231
      %314 = vmatprep.subr.mxu0 0.0
      %315 = vmatpush2.msra.mxu0 %v230
      %316 = vmatprep.subr.mxu0 0.0
      %317 = vmatpush2.msra.mxu0 %v229
      %318 = vmatprep.subr.mxu0 0.0
      %319 = vmatpush2.msra.mxu0 %v228
      %320 = vmatprep.subr.mxu0 0.0
      %321 = vmatpush2.msra.mxu0 %v227
      %322 = vmatprep.subr.mxu0 0.0
      %323 = vmatpush2.msra.mxu0 %v226
      %324 = vmatprep.subr.mxu0 0.0
      %325 = vmatpush2.msra.mxu0 %v225
      %326 = vmatprep.subr.mxu0 0.0
      %327 = vmatpush2.msra.mxu0 %v224
      %328 = vmatprep.subr.mxu0 0.0
      %329 = vmatpush2.msra.mxu0 %v223
      %330 = vmatprep.subr.mxu0 0.0
      %331 = vmatpush2.msra.mxu0 %v222
      %332 = vmatprep.subr.mxu0 0.0
      %333 = vmatpush2.msra.mxu0 %v221
      %334 = vmatprep.subr.mxu0 0.0
      %335 = vmatpush2.msra.mxu0 %v220
      %336 = vmatprep.subr.mxu0 0.0
      %337 = vmatpush2.msra.mxu0 %v219
      %338 = vmatprep.subr.mxu0 0.0
      %339 = vmatpush2.msra.mxu0 %v218
      %340 = vmatprep.subr.mxu0 0.0
      %341 = vmatpush2.msra.mxu0 %v217
      %342 = vmatprep.subr.mxu0 0.0
      %343 = vmatpush2.msra.mxu0 %v216
      %344 = vmatprep.mubr.f32.mxu0 %v249
      %345 = vmatmul.mubr.f32.gmra.mxu0 %v248
      %v346 = vpop.f32.mrf.mxu0
      %v347 = vadd.f32 0.0, %v346
      %v348 = vpop.f32.mrf.mxu0
      %349 = vmatprep.mubr.f32.mxu0 %v251
      %350 = vmatmul.mubr.f32.gmra.mxu0 %v250
      %v351 = vpop.f32.mrf.mxu0
      %v352 = vadd.f32 0.0, %v351
      %v353 = vpop.f32.mrf.mxu0
      %354 = vmatprep.mubr.f32.mxu0 %v253
      %355 = vmatmul.mubr.f32.gmra.mxu0 %v252
      %v356 = vpop.f32.mrf.mxu0
      %v357 = vadd.f32 0.0, %v356
      %v358 = vpop.f32.mrf.mxu0
      %359 = vmatprep.mubr.f32.mxu0 %v255
      %360 = vmatmul.mubr.f32.gmra.mxu0 %v254
      %v361 = vpop.f32.mrf.mxu0
      %v362 = vadd.f32 0.0, %v361
      %v363 = vpop.f32.mrf.mxu0
      %364 = vmatprep.mubr.f32.mxu0 %v257
      %365 = vmatmul.mubr.f32.gmra.mxu0 %v256
      %v366 = vpop.f32.mrf.mxu0
      %v367 = vadd.f32 0.0, %v366
      %v368 = vpop.f32.mrf.mxu0
      %369 = vmatprep.mubr.f32.mxu0 %v259
      %370 = vmatmul.mubr.f32.gmra.mxu0 %v258
      %v371 = vpop.f32.mrf.mxu0
      %v372 = vadd.f32 0.0, %v371
      %v373 = vpop.f32.mrf.mxu0
      %374 = vmatprep.mubr.f32.mxu0 %v261
      %375 = vmatmul.mubr.f32.gmra.mxu0 %v260
      %v376 = vpop.f32.mrf.mxu0
      %v377 = vadd.f32 0.0, %v376
      %v378 = vpop.f32.mrf.mxu0
      %379 = vmatprep.mubr.f32.mxu0 %v263
      %380 = vmatmul.mubr.f32.gmra.mxu0 %v262
      %v381 = vpop.f32.mrf.mxu0
      %v382 = vadd.f32 0.0, %v381
      %v383 = vpop.f32.mrf.mxu0
      %384 = vmatprep.mubr.f32.mxu0 %v265
      %385 = vmatmul.mubr.f32.gmra.mxu0 %v264
      %v386 = vpop.f32.mrf.mxu0
      %v387 = vadd.f32 0.0, %v386
      %v388 = vpop.f32.mrf.mxu0
      %389 = vmatprep.mubr.f32.mxu0 %v267
      %390 = vmatmul.mubr.f32.gmra.mxu0 %v266
      %v391 = vpop.f32.mrf.mxu0
      %v392 = vadd.f32 0.0, %v391
      %v393 = vpop.f32.mrf.mxu0
      %394 = vmatprep.mubr.f32.mxu0 %v269
      %395 = vmatmul.mubr.f32.gmra.mxu0 %v268
      %v396 = vpop.f32.mrf.mxu0
      %v397 = vadd.f32 0.0, %v396
      %v398 = vpop.f32.mrf.mxu0
      %399 = vmatprep.mubr.f32.mxu0 %v271
      %400 = vmatmul.mubr.f32.gmra.mxu0 %v270
      %v401 = vpop.f32.mrf.mxu0
      %v402 = vadd.f32 0.0, %v401
      %v403 = vpop.f32.mrf.mxu0
      %404 = vmatprep.mubr.f32.mxu0 %v273
      %405 = vmatmul.mubr.f32.gmra.mxu0 %v272
      %v406 = vpop.f32.mrf.mxu0
      %v407 = vadd.f32 0.0, %v406
      %v408 = vpop.f32.mrf.mxu0
      %409 = vmatprep.mubr.f32.mxu0 %v275
      %410 = vmatmul.mubr.f32.gmra.mxu0 %v274
      %v411 = vpop.f32.mrf.mxu0
      %v412 = vadd.f32 0.0, %v411
      %v413 = vpop.f32.mrf.mxu0
      %414 = vmatprep.mubr.f32.mxu0 %v277
      %415 = vmatmul.mubr.f32.gmra.mxu0 %v276
      %v416 = vpop.f32.mrf.mxu0
      %v417 = vadd.f32 0.0, %v416
      %v418 = vpop.f32.mrf.mxu0
      %419 = vmatprep.mubr.f32.mxu0 %v279
      %420 = vmatmul.mubr.f32.gmra.mxu0 %v278
      %v421 = vpop.f32.mrf.mxu0
      %v422 = vadd.f32 0.0, %v421
      %v423 = vpop.f32.mrf.mxu0
      %424 = vdwg.mxu0
      %v425 = vadd.f32 %v232, %v347
      %v426 = vadd.f32 %v233, %v352
      %v427 = vadd.f32 %v234, %v357
      %v428 = vadd.f32 %v235, %v362
      %v429 = vadd.f32 %v236, %v367
      %v430 = vadd.f32 %v237, %v372
      %v431 = vadd.f32 %v238, %v377
      %v432 = vadd.f32 %v239, %v382
      %v433 = vadd.f32 %v240, %v387
      %v434 = vadd.f32 %v241, %v392
      %v435 = vadd.f32 %v242, %v397
      %v436 = vadd.f32 %v243, %v402
      %v437 = vadd.f32 %v244, %v407
      %v438 = vadd.f32 %v245, %v412
      %v439 = vadd.f32 %v246, %v417
      %v440 = vadd.f32 %v247, %v422
      %441 = vst [vmem:[#allocation2] sm:$0xff] %v425
      %442 = vst [vmem:[#allocation2 + $0x8] sm:$0xff] %v426
      %443 = vst [vmem:[#allocation2 + $0x10] sm:$0xff] %v427
      %444 = vst [vmem:[#allocation2 + $0x18] sm:$0xff] %v428
      %445 = vst [vmem:[#allocation2 + $0x20] sm:$0xff] %v429
      %446 = vst [vmem:[#allocation2 + $0x28] sm:$0xff] %v430
      %447 = vst [vmem:[#allocation2 + $0x30] sm:$0xff] %v431
      %448 = vst [vmem:[#allocation2 + $0x38] sm:$0xff] %v432
      %449 = vst [vmem:[#allocation2 + $0x40] sm:$0xff] %v433
      %450 = vst [vmem:[#allocation2 + $0x48] sm:$0xff] %v434
      %451 = vst [vmem:[#allocation2 + $0x50] sm:$0xff] %v435
      %452 = vst [vmem:[#allocation2 + $0x58] sm:$0xff] %v436
      %453 = vst [vmem:[#allocation2 + $0x60] sm:$0xff] %v437
      %454 = vst [vmem:[#allocation2 + $0x68] sm:$0xff] %v438
      %455 = vst [vmem:[#allocation2 + $0x70] sm:$0xff] %v439
      %456 = vst [vmem:[#allocation2 + $0x78] sm:$0xff] %v440
      // Predicated region
      $region33: #{gg_forward.2} parent=27 // pred_check
        %p457 = pneg %p178
      $region34: #{gg_forward.2} parent=27 // pred_check_branch
        %459 = sbr.rel (%p457) target = $region36
      $region35: #{gg_forward.2} parent=27 // pred_region
        %v460 = vld [vmem:[#allocation2] sm:$0xff]
        %v461 = vld [vmem:[#allocation2 + $0x8] sm:$0xff]
        %v462 = vld [vmem:[#allocation2 + $0x10] sm:$0xff]
        %v463 = vld [vmem:[#allocation2 + $0x18] sm:$0xff]
        %v464 = vld [vmem:[#allocation2 + $0x20] sm:$0xff]
        %v465 = vld [vmem:[#allocation2 + $0x28] sm:$0xff]
        %v466 = vld [vmem:[#allocation2 + $0x30] sm:$0xff]
        %v467 = vld [vmem:[#allocation2 + $0x38] sm:$0xff]
        %v468 = vld [vmem:[#allocation2 + $0x40] sm:$0xff]
        %v469 = vld [vmem:[#allocation2 + $0x48] sm:$0xff]
        %v470 = vld [vmem:[#allocation2 + $0x50] sm:$0xff]
        %v471 = vld [vmem:[#allocation2 + $0x58] sm:$0xff]
        %v472 = vld [vmem:[#allocation2 + $0x60] sm:$0xff]
        %v473 = vld [vmem:[#allocation2 + $0x68] sm:$0xff]
        %v474 = vld [vmem:[#allocation2 + $0x70] sm:$0xff]
        %v475 = vld [vmem:[#allocation2 + $0x78] sm:$0xff]
        %476 = vst [vmem:[%s176] sm:$0xff] %v460
        %477 = vst [vmem:[%s176 + $0x8] sm:$0xff] %v461
        %478 = vst [vmem:[%s176 + $0x10] sm:$0xff] %v462
        %479 = vst [vmem:[%s176 + $0x18] sm:$0xff] %v463
        %480 = vst [vmem:[%s176 + $0x20] sm:$0xff] %v464
        %481 = vst [vmem:[%s176 + $0x28] sm:$0xff] %v465
        %482 = vst [vmem:[%s176 + $0x30] sm:$0xff] %v466
        %483 = vst [vmem:[%s176 + $0x38] sm:$0xff] %v467
        %484 = vst [vmem:[%s176 + $0x40] sm:$0xff] %v468
        %485 = vst [vmem:[%s176 + $0x48] sm:$0xff] %v469
        %486 = vst [vmem:[%s176 + $0x50] sm:$0xff] %v470
        %487 = vst [vmem:[%s176 + $0x58] sm:$0xff] %v471
        %488 = vst [vmem:[%s176 + $0x60] sm:$0xff] %v472
        %489 = vst [vmem:[%s176 + $0x68] sm:$0xff] %v473
        %490 = vst [vmem:[%s176 + $0x70] sm:$0xff] %v474
        %491 = vst [vmem:[%s176 + $0x78] sm:$0xff] %v475
      $region36: #{gg_forward.2} parent=27 // pred_fallthru
        _
      %s492 = smul.u32 16, %s17
      %p493 = scmp.lt.s32.totalorder %s492, 47
      %s494 = scalar_select %p493, %s492, 47
      %s495 = smul.addr %s494, 8
      %s496 = scalar_lea.vmem %s2, %s495
      // Predicated region
      $region37: #{gg_forward.2} parent=27 // pred_check
        %p497 = pneg %p92
      $region38: #{gg_forward.2} parent=27 // pred_check_branch
        %499 = sbr.rel (%p497) target = $region40
      $region39: #{gg_forward.2} parent=27 // pred_region
        %s500 = smul.u32 16, %s17
      $region40: #{gg_forward.2} parent=27 // pred_fallthru
        _
    $region28: #{gg_forward.2} parent=5 // pred_fallthru
      _
    %p501 = scmp.le.s32.totalorder 2, %s8
    // Predicated region
    $region41: #{gg_forward.2} parent=5 // pred_check
      %p502 = pneg %p501
    $region42: #{gg_forward.2} parent=5 // pred_check_branch
      %504 = sbr.rel (%p502) target = $region44
    $region43: #{gg_forward.2} parent=5 // pred_region
      %s505 = ssub.s32 %s8, 2
      // Predicated region
      $region45: #{gg_forward.2} parent=43 // pred_check
        %p506 = pneg %p98
      $region46: #{gg_forward.2} parent=43 // pred_check_branch
        %508 = sbr.rel (%p506) target = $region48
      $region47: #{gg_forward.2} parent=43 // pred_region
        %s509 = smul.u32 16, %s19
        %p510 = scmp.lt.s32.totalorder %s509, 47
        %s511 = scalar_select %p510, %s509, 47
        %s512 = smul.addr %s511, 8
        %s513 = scalar_lea.vmem %s2, %s512
      $region48: #{gg_forward.2} parent=43 // pred_fallthru
        _
    $region44: #{gg_forward.2} parent=5 // pred_fallthru
      _
  $region6: #{gg_forward.2} parent=0 // loop_footer
    %s12 = sadd.s32 1, %s8
  $region7: #{gg_forward.2} parent=0 // loop_footer_branch
    %7 = sbr.rel target = $region3
  $region8: #{gg_forward.2} parent=0 // loop_exit
    _

// kernel: gg_forward.3
$region0: #{gg_forward.3}
  #allocation0 [shape = 'u32[]', space=smem, size = 0x4, offset = 0x4, fixed_abs, tag = 'smem constant byte address 0x4 - core index']
  #allocation1 [shape = 'u32[144,128]{1,0:T(1,128)}', space=vmem, size = 0x12000, scoped, tag = 'internal scratch']
  #allocation2 [shape = 'f32[128,128]{1,0:T(8,128)}', space=vmem, size = 0x10000, scoped, tag = 'scratch operand']
  %s0 = inlined_call_operand.vmem [shape: f32[300,300], index: 0, kind: input, shape index: {}]
  %s1 = inlined_call_operand.vmem [shape: f32[384,128], index: 1, kind: input, shape index: {}]
  %s2 = inlined_call_operand.vmem [shape: f32[1,128], index: 2, kind: input, shape index: {}]
  %s3 = inlined_call_operand.vmem [shape: f32[300,128], index: 3, kind: output, shape index: {}]
  %s4 = sld [smem:[#allocation0]]
  $region157: #{gg_forward.3} parent=0
    _
  %s6 = ssub.s32 1, %s4
  %s7 = scalar_select 0, %s6, %s4
  $region1: #{gg_forward.3} parent=0
    #allocation3 [shape = 'u8[131072]{0}', space=vmem, size = 0x20000, scoped, tag = 'input window, operand 0']
    #allocation4 [shape = 'u8[131072]{0}', space=vmem, size = 0x20000, scoped, tag = 'output window, operand 0']
    loop: start=0, step=1, limit=11
    $region2: #{gg_forward.3} parent=1 // loop_pre_header
      _
    $region3: #{gg_forward.3} parent=1 // loop_header
      %s9 = sphi 0, %s13
      %p10 = scmp.ge.s32.totalorder %s9, 11
      %s16 = sphi 0, %s28
      %s17 = sphi 0, %s24
      %s18 = sphi 0, %s16
      %s19 = sphi 0, %s17
      %s20 = sphi 0, %s18
      %s21 = sphi 0, %s19
      %s33 = sphi 0, %s35
      %s36 = sphi 0, %s33
      %s37 = sphi 0, %s36
      %s53 = sphi 0, %s37
      %s57 = sphi 0, %s57
      %s59 = sphi 0, %s57
      %s60 = sphi 0, %s59
      %s74 = sphi 0, %s60
      %s78 = sphi 0, %s78
      %s80 = sphi 0, %s78
      %s81 = sphi 0, %s80
      %s95 = sphi 0, %s81
      %s101 = sphi 0, %s103
      %s104 = sphi 0, %s101
      %s105 = sphi 0, %s104
      %s121 = sphi 0, %s105
    $region4: #{gg_forward.3} parent=1 // loop_header_branch
      %12 = sbr.rel (%p10) target = $region8
    $region5: #{gg_forward.3} parent=1 // loop_body
      %s14 = ssub.s32 %s9, 1
      %s15 = ssub.s32 %s9, 2
      %s22 = sadd.s32 1, %s17
      %p23 = scmp.ge.s32.totalorder %s22, 3
      %s24 = scalar_select %p23, 0, %s22
      %s25 = sadd.s32 1, %s16
      %s26 = scalar_select %p23, %s25, %s16
      %p27 = scmp.ge.s32.totalorder %s26, 3
      %s28 = scalar_select %p27, 0, %s26
      %s29 = ssub.s32 %s16, %s28
      %s30 = ssub.s32 %s17, %s24
      %s31 = sor.u32 %s29, %s30
      %p32 = scmp.eq.s32.totalorder %s31, 0
      %s34 = sadd.s32 %s33, 1
      %s35 = scalar_select %p32, %s33, %s34
      %p38 = pneg %p32
      %p39 = scmp.eq.s32.totalorder %s9, 8
      %p40 = por %p38, %p39
      %p41 = scmp.ne.s32.totalorder %s33, %s36
      %p42 = scmp.eq.s32.totalorder %s9, 0
      %p43 = por %p41, %p42
      %p44 = scmp.ne.s32.totalorder %s33, %s36
      %p45 = scmp.eq.s32.totalorder %s14, 8
      %p46 = por %p44, %p45
      %p47 = scmp.ne.s32.totalorder %s36, %s37
      %p48 = scmp.eq.s32.totalorder %s14, 0
      %p49 = por %p47, %p48
      %p50 = scmp.ne.s32.totalorder %s36, %s37
      %p51 = scmp.eq.s32.totalorder %s15, 8
      %p52 = por %p50, %p51
      %p54 = scmp.ne.s32.totalorder %s37, %s53
      %p55 = scmp.eq.s32.totalorder %s15, 0
      %p56 = por %p54, %p55
      %s58 = sadd.s32 %s57, 1
      %p61 = scmp.eq.s32.totalorder %s9, 8
      %p62 = scmp.ne.s32.totalorder %s57, %s59
      %p63 = scmp.eq.s32.totalorder %s9, 0
      %p64 = por %p62, %p63
      %p65 = scmp.ne.s32.totalorder %s57, %s59
      %p66 = scmp.eq.s32.totalorder %s14, 8
      %p67 = por %p65, %p66
      %p68 = scmp.ne.s32.totalorder %s59, %s60
      %p69 = scmp.eq.s32.totalorder %s14, 0
      %p70 = por %p68, %p69
      %p71 = scmp.ne.s32.totalorder %s59, %s60
      %p72 = scmp.eq.s32.totalorder %s15, 8
      %p73 = por %p71, %p72
      %p75 = scmp.ne.s32.totalorder %s60, %s74
      %p76 = scmp.eq.s32.totalorder %s15, 0
      %p77 = por %p75, %p76
      %s79 = sadd.s32 %s78, 1
      %p82 = scmp.eq.s32.totalorder %s9, 8
      %p83 = scmp.ne.s32.totalorder %s78, %s80
      %p84 = scmp.eq.s32.totalorder %s9, 0
      %p85 = por %p83, %p84
      %p86 = scmp.ne.s32.totalorder %s78, %s80
      %p87 = scmp.eq.s32.totalorder %s14, 8
      %p88 = por %p86, %p87
      %p89 = scmp.ne.s32.totalorder %s80, %s81
      %p90 = scmp.eq.s32.totalorder %s14, 0
      %p91 = por %p89, %p90
      %p92 = scmp.ne.s32.totalorder %s80, %s81
      %p93 = scmp.eq.s32.totalorder %s15, 8
      %p94 = por %p92, %p93
      %p96 = scmp.ne.s32.totalorder %s81, %s95
      %p97 = scmp.eq.s32.totalorder %s15, 0
      %p98 = por %p96, %p97
      %s99 = ssub.s32 %s16, %s28
      %p100 = scmp.eq.s32.totalorder %s99, 0
      %s102 = sadd.s32 %s101, 1
      %s103 = scalar_select %p100, %s101, %s102
      %p106 = pneg %p100
      %p107 = scmp.eq.s32.totalorder %s9, 8
      %p108 = por %p106, %p107
      %p109 = scmp.ne.s32.totalorder %s101, %s104
      %p110 = scmp.eq.s32.totalorder %s9, 0
      %p111 = por %p109, %p110
      %p112 = scmp.ne.s32.totalorder %s101, %s104
      %p113 = scmp.eq.s32.totalorder %s14, 8
      %p114 = por %p112, %p113
      %p115 = scmp.ne.s32.totalorder %s104, %s105
      %p116 = scmp.eq.s32.totalorder %s14, 0
      %p117 = por %p115, %p116
      %p118 = scmp.ne.s32.totalorder %s104, %s105
      %p119 = scmp.eq.s32.totalorder %s15, 8
      %p120 = por %p118, %p119
      %p122 = scmp.ne.s32.totalorder %s105, %s121
      %p123 = scmp.eq.s32.totalorder %s15, 0
      %p124 = por %p122, %p123
      %p125 = scmp.le.s32.totalorder 1, %s9
      %p126 = scmp.lt.s32.totalorder %s9, 10
      %p127 = pnand %p125, %p126
      %p128 = pneg %p127
      // Predicated region
      $region9: #{gg_forward.3} parent=5 // pred_check
        _
      $region10: #{gg_forward.3} parent=5 // pred_check_branch
        %130 = sbr.rel (%p127) target = $region12
      $region11: #{gg_forward.3} parent=5 // pred_region
        %s131 = ssub.s32 %s9, 1
        // Predicated region
        $region13: #{gg_forward.3} parent=11 // pred_check
          %p132 = pneg %p70
        $region14: #{gg_forward.3} parent=11 // pred_check_branch
          %134 = sbr.rel (%p132) target = $region16
        $region15: #{gg_forward.3} parent=11 // pred_region
          _
        $region16: #{gg_forward.3} parent=11 // pred_fallthru
          _
        // Predicated region
        $region17: #{gg_forward.3} parent=11 // pred_check
          %p135 = pneg %p91
        $region18: #{gg_forward.3} parent=11 // pred_check_branch
          %137 = sbr.rel (%p135) target = $region20
        $region19: #{gg_forward.3} parent=11 // pred_region
          _
        $region20: #{gg_forward.3} parent=11 // pred_fallthru
          _
      $region12: #{gg_forward.3} parent=5 // pred_fallthru
        _
      %p138 = scmp.lt.s32.totalorder %s9, 9
      // Predicated region
      $region21: #{gg_forward.3} parent=5 // pred_check
        %p139 = pneg %p138
      $region22: #{gg_forward.3} parent=5 // pred_check_branch
        %141 = sbr.rel (%p139) target = $region24
      $region23: #{gg_forward.3} parent=5 // pred_region
        // Predicated region
        $region25: #{gg_forward.3} parent=23 // pred_check
          %p142 = pneg %p43
        $region26: #{gg_forward.3} parent=23 // pred_check_branch
          %144 = sbr.rel (%p142) target = $region28
        $region27: #{gg_forward.3} parent=23 // pred_region
          %s145 = sand.u32 %s33, 1
          %s146 = sand.u32 %s33, 1
          %s147 = smul.addr %s146, 128
          %s148 = scalar_lea.vmem [#allocation3], %s147
          %s149 = smul.u32 16, %s16
          %s150 = ssub.s32 38, %s149
          %p151 = scmp.lt.s32.totalorder %s150, 16
          %s152 = scalar_select %p151, %s150, 16
          %s153 = smul.u32 128, %s152
          %p154 = scmp.ne.s32.totalorder 0, %s153
          %s155 = smul.addr %s149, 3
          %s156 = sadd.s32 %s17, %s155
          %s157 = smul.addr %s156, 8
          %s158 = scalar_lea.vmem %s0, %s157
          // Predicated region
          $region29: #{gg_forward.3} parent=27 // pred_check
            %p159 = pneg %p154
          $region30: #{gg_forward.3} parent=27 // pred_check_branch
            %161 = sbr.rel (%p159) target = $region32
          $region31: #{gg_forward.3} parent=27 // pred_region
            // Predicated region
            $region33: #{gg_forward.3} parent=31 // pred_check
              _
            $region34: #{gg_forward.3} parent=31 // pred_check_branch
              %163 = sbr.rel (0) target = $region36
            $region35: #{gg_forward.3} parent=31 // pred_region
              // Predicated region
              $region55: #{gg_forward.3} parent=35 // pred_check
                _
              $region56: #{gg_forward.3} parent=35 // pred_check_branch
                %243 = sbr.rel (0) target = $region58
              $region57: #{gg_forward.3} parent=35 // pred_region
                %s244 = sshrl.u32 %s152, 4
                // While loop
                $region59: #{gg_forward.3} parent=57 // loop_pre_header
                  _
                $region60: #{gg_forward.3} parent=57 // loop_header
                  %s246 = sphi 0, %s248
                  %p247 = scmp.ge.s32.totalorder %s246, %s244
                  %s251 = sphi 0, %s288
                  %s252 = sphi %s158, %s291
                  %s253 = sphi %s148, %s292
                $region61: #{gg_forward.3} parent=57 // loop_header_branch
                  %250 = sbr.rel (%p247) target = $region65
                $region62: #{gg_forward.3} parent=57 // loop_body
                  %v254 = vld [vmem:[%s252] sm:$0xff]
                  %255 = vst [vmem:[%s253] sm:$0xff] %v254
                  %v256 = vld [vmem:[%s252 + $0x18] sm:$0xff]
                  %257 = vst [vmem:[%s253 + $0x8] sm:$0xff] %v256
                  %v258 = vld [vmem:[%s252 + $0x30] sm:$0xff]
                  %259 = vst [vmem:[%s253 + $0x10] sm:$0xff] %v258
                  %v260 = vld [vmem:[%s252 + $0x48] sm:$0xff]
                  %261 = vst [vmem:[%s253 + $0x18] sm:$0xff] %v260
                  %v262 = vld [vmem:[%s252 + $0x60] sm:$0xff]
                  %263 = vst [vmem:[%s253 + $0x20] sm:$0xff] %v262
                  %v264 = vld [vmem:[%s252 + $0x78] sm:$0xff]
                  %265 = vst [vmem:[%s253 + $0x28] sm:$0xff] %v264
                  %v266 = vld [vmem:[%s252 + $0x90] sm:$0xff]
                  %267 = vst [vmem:[%s253 + $0x30] sm:$0xff] %v266
                  %v268 = vld [vmem:[%s252 + $0xa8] sm:$0xff]
                  %269 = vst [vmem:[%s253 + $0x38] sm:$0xff] %v268
                  %v270 = vld [vmem:[%s252 + $0xc0] sm:$0xff]
                  %271 = vst [vmem:[%s253 + $0x40] sm:$0xff] %v270
                  %v272 = vld [vmem:[%s252 + $0xd8] sm:$0xff]
                  %273 = vst [vmem:[%s253 + $0x48] sm:$0xff] %v272
                  %v274 = vld [vmem:[%s252 + $0xf0] sm:$0xff]
                  %275 = vst [vmem:[%s253 + $0x50] sm:$0xff] %v274
                  %v276 = vld [vmem:[%s252 + $0x108] sm:$0xff]
                  %277 = vst [vmem:[%s253 + $0x58] sm:$0xff] %v276
                  %v278 = vld [vmem:[%s252 + $0x120] sm:$0xff]
                  %279 = vst [vmem:[%s253 + $0x60] sm:$0xff] %v278
                  %v280 = vld [vmem:[%s252 + $0x138] sm:$0xff]
                  %281 = vst [vmem:[%s253 + $0x68] sm:$0xff] %v280
                  %v282 = vld [vmem:[%s252 + $0x150] sm:$0xff]
                  %283 = vst [vmem:[%s253 + $0x70] sm:$0xff] %v282
                  %v284 = vld [vmem:[%s252 + $0x168] sm:$0xff]
                  %285 = vst [vmem:[%s253 + $0x78] sm:$0xff] %v284
                  %s286 = sadd.s32 1, %s251
                  %p287 = scmp.ge.s32.totalorder %s286, %s244
                  %s288 = scalar_select %p287, 0, %s286
                  %s289 = smul.u32 %s288, 384
                  %s290 = smul.u32 %s288, 128
                  %s291 = scalar_lea.vmem %s158, %s289
                  %s292 = scalar_lea.vmem %s148, %s290 [#allocation3]
                $region63: #{gg_forward.3} parent=57 // loop_footer
                  %s248 = sadd.s32 %s246, 1
                $region64: #{gg_forward.3} parent=57 // loop_footer_branch
                  %245 = sbr.rel target = $region60
                $region65: #{gg_forward.3} parent=57 // loop_exit
                  _
                %s293 = sshrl.u32 %s152, 4
                %s294 = sand.u32 %s152, 15
                %s295 = smul.u32 %s293, 16
                %s296 = smul.u32 24, %s295
                %s297 = scalar_lea.vmem %s158, %s296
                %s298 = smul.u32 8, %s295
                %s299 = scalar_lea.vmem %s148, %s298 [#allocation3]
                // While loop
                $region66: #{gg_forward.3} parent=57 // loop_pre_header
                  _
                $region67: #{gg_forward.3} parent=57 // loop_header
                  %s301 = sphi 0, %s303
                  %p302 = scmp.ge.s32.totalorder %s301, %s294
                  %s306 = sphi 0, %s313
                  %s307 = sphi %s297, %s316
                  %s308 = sphi %s299, %s317
                $region68: #{gg_forward.3} parent=57 // loop_header_branch
                  %305 = sbr.rel (%p302) target = $region72
                $region69: #{gg_forward.3} parent=57 // loop_body
                  %v309 = vld [vmem:[%s307] sm:$0xff]
                  %310 = vst [vmem:[%s308] sm:$0xff] %v309
                  %s311 = sadd.s32 1, %s306
                  %p312 = scmp.ge.s32.totalorder %s311, %s294
                  %s313 = scalar_select %p312, 0, %s311
                  %s314 = smul.u32 %s313, 24
                  %s315 = smul.u32 %s313, 8
                  %s316 = scalar_lea.vmem %s297, %s314
                  %s317 = scalar_lea.vmem %s299, %s315 [#allocation3]
                $region70: #{gg_forward.3} parent=57 // loop_footer
                  %s303 = sadd.s32 %s301, 1
                $region71: #{gg_forward.3} parent=57 // loop_footer_branch
                  %300 = sbr.rel target = $region67
                $region72: #{gg_forward.3} parent=57 // loop_exit
                  _
              $region58: #{gg_forward.3} parent=35 // pred_fallthru
                _
              // Predicated region
              $region73: #{gg_forward.3} parent=35 // pred_check
                _
              $region74: #{gg_forward.3} parent=35 // pred_check_branch
                %319 = sbr.rel target = $region76
              $region75: #{gg_forward.3} parent=35 // pred_region
                _
              $region76: #{gg_forward.3} parent=35 // pred_fallthru
                _
            $region36: #{gg_forward.3} parent=31 // pred_fallthru
              _
            // Predicated region
            $region37: #{gg_forward.3} parent=31 // pred_check
              _
            $region38: #{gg_forward.3} parent=31 // pred_check_branch
              %165 = sbr.rel target = $region40
            $region39: #{gg_forward.3} parent=31 // pred_region
              %s167 = ssub.s32 256, 1
              %s168 = sshrl.u32 %s152, 4
              // While loop
              $region41: #{gg_forward.3} parent=39 // loop_pre_header
                _
              $region42: #{gg_forward.3} parent=39 // loop_header
                %s170 = sphi 0, %s172
                %p171 = scmp.ge.s32.totalorder %s170, %s168
                %s175 = sphi 0, %s212
                %s176 = sphi %s158, %s215
                %s177 = sphi %s148, %s216
              $region43: #{gg_forward.3} parent=39 // loop_header_branch
                %174 = sbr.rel (%p171) target = $region47
              $region44: #{gg_forward.3} parent=39 // loop_body
                %v178 = vld [vmem:[%s176] sm:%s167]
                %179 = vst [vmem:[%s177] sm:%s167] %v178
                %v180 = vld [vmem:[%s176 + $0x18] sm:%s167]
                %181 = vst [vmem:[%s177 + $0x8] sm:%s167] %v180
                %v182 = vld [vmem:[%s176 + $0x30] sm:%s167]
                %183 = vst [vmem:[%s177 + $0x10] sm:%s167] %v182
                %v184 = vld [vmem:[%s176 + $0x48] sm:%s167]
                %185 = vst [vmem:[%s177 + $0x18] sm:%s167] %v184
                %v186 = vld [vmem:[%s176 + $0x60] sm:%s167]
                %187 = vst [vmem:[%s177 + $0x20] sm:%s167] %v186
                %v188 = vld [vmem:[%s176 + $0x78] sm:%s167]
                %189 = vst [vmem:[%s177 + $0x28] sm:%s167] %v188
                %v190 = vld [vmem:[%s176 + $0x90] sm:%s167]
                %191 = vst [vmem:[%s177 + $0x30] sm:%s167] %v190
                %v192 = vld [vmem:[%s176 + $0xa8] sm:%s167]
                %193 = vst [vmem:[%s177 + $0x38] sm:%s167] %v192
                %v194 = vld [vmem:[%s176 + $0xc0] sm:%s167]
                %195 = vst [vmem:[%s177 + $0x40] sm:%s167] %v194
                %v196 = vld [vmem:[%s176 + $0xd8] sm:%s167]
                %197 = vst [vmem:[%s177 + $0x48] sm:%s167] %v196
                %v198 = vld [vmem:[%s176 + $0xf0] sm:%s167]
                %199 = vst [vmem:[%s177 + $0x50] sm:%s167] %v198
                %v200 = vld [vmem:[%s176 + $0x108] sm:%s167]
                %201 = vst [vmem:[%s177 + $0x58] sm:%s167] %v200
                %v202 = vld [vmem:[%s176 + $0x120] sm:%s167]
                %203 = vst [vmem:[%s177 + $0x60] sm:%s167] %v202
                %v204 = vld [vmem:[%s176 + $0x138] sm:%s167]
                %205 = vst [vmem:[%s177 + $0x68] sm:%s167] %v204
                %v206 = vld [vmem:[%s176 + $0x150] sm:%s167]
                %207 = vst [vmem:[%s177 + $0x70] sm:%s167] %v206
                %v208 = vld [vmem:[%s176 + $0x168] sm:%s167]
                %209 = vst [vmem:[%s177 + $0x78] sm:%s167] %v208
                %s210 = sadd.s32 1, %s175
                %p211 = scmp.ge.s32.totalorder %s210, %s168
                %s212 = scalar_select %p211, 0, %s210
                %s213 = smul.u32 %s212, 384
                %s214 = smul.u32 %s212, 128
                %s215 = scalar_lea.vmem %s158, %s213
                %s216 = scalar_lea.vmem %s148, %s214 [#allocation3]
              $region45: #{gg_forward.3} parent=39 // loop_footer
                %s172 = sadd.s32 %s170, 1
              $region46: #{gg_forward.3} parent=39 // loop_footer_branch
                %169 = sbr.rel target = $region42
              $region47: #{gg_forward.3} parent=39 // loop_exit
                _
              %s217 = sshrl.u32 %s152, 4
              %s218 = sand.u32 %s152, 15
              %s219 = smul.u32 %s217, 16
              %s220 = smul.u32 24, %s219
              %s221 = scalar_lea.vmem %s158, %s220
              %s222 = smul.u32 8, %s219
              %s223 = scalar_lea.vmem %s148, %s222 [#allocation3]
              // While loop
              $region48: #{gg_forward.3} parent=39 // loop_pre_header
                _
              $region49: #{gg_forward.3} parent=39 // loop_header
                %s225 = sphi 0, %s227
                %p226 = scmp.ge.s32.totalorder %s225, %s218
                %s230 = sphi 0, %s237
                %s231 = sphi %s221, %s240
                %s232 = sphi %s223, %s241
              $region50: #{gg_forward.3} parent=39 // loop_header_branch
                %229 = sbr.rel (%p226) target = $region54
              $region51: #{gg_forward.3} parent=39 // loop_body
                %v233 = vld [vmem:[%s231] sm:%s167]
                %234 = vst [vmem:[%s232] sm:%s167] %v233
                %s235 = sadd.s32 1, %s230
                %p236 = scmp.ge.s32.totalorder %s235, %s218
                %s237 = scalar_select %p236, 0, %s235
                %s238 = smul.u32 %s237, 24
                %s239 = smul.u32 %s237, 8
                %s240 = scalar_lea.vmem %s221, %s238
                %s241 = scalar_lea.vmem %s223, %s239 [#allocation3]
              $region52: #{gg_forward.3} parent=39 // loop_footer
                %s227 = sadd.s32 %s225, 1
              $region53: #{gg_forward.3} parent=39 // loop_footer_branch
                %224 = sbr.rel target = $region49
              $region54: #{gg_forward.3} parent=39 // loop_exit
                _
            $region40: #{gg_forward.3} parent=31 // pred_fallthru
              _
          $region32: #{gg_forward.3} parent=27 // pred_fallthru
            _
          %320 = vnop
        $region28: #{gg_forward.3} parent=23 // pred_fallthru
          _
      $region24: #{gg_forward.3} parent=5 // pred_fallthru
        _
      %p321 = scmp.le.s32.totalorder 1, %s9
      %p322 = scmp.lt.s32.totalorder %s9, 10
      %p323 = pnand %p321, %p322
      %p324 = pneg %p323
      // Predicated region
      $region77: #{gg_forward.3} parent=5 // pred_check
        _
      $region78: #{gg_forward.3} parent=5 // pred_check_branch
        %326 = sbr.rel (%p323) target = $region80
      $region79: #{gg_forward.3} parent=5 // pred_region
        %s327 = ssub.s32 %s9, 1
        %s328 = sand.u32 %s36, 1
        %s329 = sand.u32 %s36, 1
        %s330 = smul.addr %s329, 128
        %s331 = scalar_lea.vmem [#allocation3], %s330
        // Predicated region
        $region81: #{gg_forward.3} parent=79 // pred_check
          %p332 = pneg %p49
        $region82: #{gg_forward.3} parent=79 // pred_check_branch
          %334 = sbr.rel (%p332) target = $region84
        $region83: #{gg_forward.3} parent=79 // pred_region
          _
        $region84: #{gg_forward.3} parent=79 // pred_fallthru
          _
        %s335 = sand.u32 %s36, 1
        %s336 = sand.u32 %s36, 1
        %s337 = smul.addr %s336, 128
        %s338 = scalar_lea.vmem [#allocation3], %s337
        %p339 = pneg %p49
        %p340 = pneg %p46
        %p341 = pneg %p70
        %p342 = pneg %p67
        %p343 = pneg %p91
        %p344 = pneg %p88
        %p345 = pneg %p117
        %p346 = pneg %p114
        %s347 = sand.u32 %s104, 1
        %s348 = sand.u32 %s104, 1
        %s349 = smul.addr %s348, 128
        %s350 = scalar_lea.vmem [#allocation4], %s349
        %s351 = smul.u32 16, %s18
        %s352 = ssub.s32 38, %s351
        %p353 = scmp.lt.s32.totalorder %s352, 16
        %s354 = scalar_select %p353, %s352, 16
        %s355 = smul.u32 128, %s354
        %s356 = smul.u32 16, %s18
        %s357 = ssub.s32 38, %s356
        %p358 = scmp.lt.s32.totalorder %s357, 16
        %s359 = scalar_select %p358, %s357, 16
        %s360 = smul.u32 128, %s359
        %p361 = scmp.eq.s32.totalorder %s19, 0
        // Predicated region
        $region85: #{gg_forward.3} parent=79 // pred_check
          %p362 = pneg %p361
        $region86: #{gg_forward.3} parent=79 // pred_check_branch
          %364 = sbr.rel (%p362) target = $region88
        $region87: #{gg_forward.3} parent=79 // pred_region
          %365 = vst [vmem:[#allocation2] sm:$0xff] 0.0
          %366 = vst [vmem:[#allocation2 + $0x8] sm:$0xff] 0.0
          %367 = vst [vmem:[#allocation2 + $0x10] sm:$0xff] 0.0
          %368 = vst [vmem:[#allocation2 + $0x18] sm:$0xff] 0.0
          %369 = vst [vmem:[#allocation2 + $0x20] sm:$0xff] 0.0
          %370 = vst [vmem:[#allocation2 + $0x28] sm:$0xff] 0.0
          %371 = vst [vmem:[#allocation2 + $0x30] sm:$0xff] 0.0
          %372 = vst [vmem:[#allocation2 + $0x38] sm:$0xff] 0.0
          %373 = vst [vmem:[#allocation2 + $0x40] sm:$0xff] 0.0
          %374 = vst [vmem:[#allocation2 + $0x48] sm:$0xff] 0.0
          %375 = vst [vmem:[#allocation2 + $0x50] sm:$0xff] 0.0
          %376 = vst [vmem:[#allocation2 + $0x58] sm:$0xff] 0.0
          %377 = vst [vmem:[#allocation2 + $0x60] sm:$0xff] 0.0
          %378 = vst [vmem:[#allocation2 + $0x68] sm:$0xff] 0.0
          %379 = vst [vmem:[#allocation2 + $0x70] sm:$0xff] 0.0
          %380 = vst [vmem:[#allocation2 + $0x78] sm:$0xff] 0.0
        $region88: #{gg_forward.3} parent=79 // pred_fallthru
          _
        %s381 = smul.u32 %s19, 128
        %s382 = scalar_lea.vmem %s1, %s381
        %v383 = vld [vmem:[%s382] sm:$0xff]
        %v384 = vld [vmem:[%s382 + $0x8] sm:$0xff]
        %v385 = vld [vmem:[%s382 + $0x10] sm:$0xff]
        %v386 = vld [vmem:[%s382 + $0x18] sm:$0xff]
        %v387 = vld [vmem:[%s382 + $0x20] sm:$0xff]
        %v388 = vld [vmem:[%s382 + $0x28] sm:$0xff]
        %v389 = vld [vmem:[%s382 + $0x30] sm:$0xff]
        %v390 = vld [vmem:[%s382 + $0x38] sm:$0xff]
        %v391 = vld [vmem:[%s382 + $0x40] sm:$0xff]
        %v392 = vld [vmem:[%s382 + $0x48] sm:$0xff]
        %v393 = vld [vmem:[%s382 + $0x50] sm:$0xff]
        %v394 = vld [vmem:[%s382 + $0x58] sm:$0xff]
        %v395 = vld [vmem:[%s382 + $0x60] sm:$0xff]
        %v396 = vld [vmem:[%s382 + $0x68] sm:$0xff]
        %v397 = vld [vmem:[%s382 + $0x70] sm:$0xff]
        %v398 = vld [vmem:[%s382 + $0x78] sm:$0xff]
        %p399 = scmp.lt.s32.totalorder %s19, 2
        // Predicated region
        $region89: #{gg_forward.3} parent=79 // pred_check
          %p400 = pneg %p399
        $region90: #{gg_forward.3} parent=79 // pred_check_branch
          %402 = sbr.rel (%p400) target = $region92
        $region91: #{gg_forward.3} parent=79 // pred_region
          %v403 = vld [vmem:[%s331] sm:$0xff]
          %v404 = vld [vmem:[%s331 + $0x8] sm:$0xff]
          %v405 = vld [vmem:[%s331 + $0x10] sm:$0xff]
          %v406 = vld [vmem:[%s331 + $0x18] sm:$0xff]
          %v407 = vld [vmem:[%s331 + $0x20] sm:$0xff]
          %v408 = vld [vmem:[%s331 + $0x28] sm:$0xff]
          %v409 = vld [vmem:[%s331 + $0x30] sm:$0xff]
          %v410 = vld [vmem:[%s331 + $0x38] sm:$0xff]
          %v411 = vld [vmem:[%s331 + $0x40] sm:$0xff]
          %v412 = vld [vmem:[%s331 + $0x48] sm:$0xff]
          %v413 = vld [vmem:[%s331 + $0x50] sm:$0xff]
          %v414 = vld [vmem:[%s331 + $0x58] sm:$0xff]
          %v415 = vld [vmem:[%s331 + $0x60] sm:$0xff]
          %v416 = vld [vmem:[%s331 + $0x68] sm:$0xff]
          %v417 = vld [vmem:[%s331 + $0x70] sm:$0xff]
          %v418 = vld [vmem:[%s331 + $0x78] sm:$0xff]
          %v419 = vld [vmem:[#allocation2] sm:$0xff]
          %v420 = vld [vmem:[#allocation2 + $0x8] sm:$0xff]
          %v421 = vld [vmem:[#allocation2 + $0x10] sm:$0xff]
          %v422 = vld [vmem:[#allocation2 + $0x18] sm:$0xff]
          %v423 = vld [vmem:[#allocation2 + $0x20] sm:$0xff]
          %v424 = vld [vmem:[#allocation2 + $0x28] sm:$0xff]
          %v425 = vld [vmem:[#allocation2 + $0x30] sm:$0xff]
          %v426 = vld [vmem:[#allocation2 + $0x38] sm:$0xff]
          %v427 = vld [vmem:[#allocation2 + $0x40] sm:$0xff]
          %v428 = vld [vmem:[#allocation2 + $0x48] sm:$0xff]
          %v429 = vld [vmem:[#allocation2 + $0x50] sm:$0xff]
          %v430 = vld [vmem:[#allocation2 + $0x58] sm:$0xff]
          %v431 = vld [vmem:[#allocation2 + $0x60] sm:$0xff]
          %v432 = vld [vmem:[#allocation2 + $0x68] sm:$0xff]
          %v433 = vld [vmem:[#allocation2 + $0x70] sm:$0xff]
          %v434 = vld [vmem:[#allocation2 + $0x78] sm:$0xff]
          %435 = vmatprep.subr.mxu0 0.0
          %436 = vmatpush1.msra.mxu0 %v398
          %437 = vmatprep.subr.mxu0 0.0
          %438 = vmatpush1.msra.mxu0 %v397
          %439 = vmatprep.subr.mxu0 0.0
          %440 = vmatpush1.msra.mxu0 %v396
          %441 = vmatprep.subr.mxu0 0.0
          %442 = vmatpush1.msra.mxu0 %v395
          %443 = vmatprep.subr.mxu0 0.0
          %444 = vmatpush1.msra.mxu0 %v394
          %445 = vmatprep.subr.mxu0 0.0
          %446 = vmatpush1.msra.mxu0 %v393
          %447 = vmatprep.subr.mxu0 0.0
          %448 = vmatpush1.msra.mxu0 %v392
          %449 = vmatprep.subr.mxu0 0.0
          %450 = vmatpush1.msra.mxu0 %v391
          %451 = vmatprep.subr.mxu0 0.0
          %452 = vmatpush1.msra.mxu0 %v390
          %453 = vmatprep.subr.mxu0 0.0
          %454 = vmatpush1.msra.mxu0 %v389
          %455 = vmatprep.subr.mxu0 0.0
          %456 = vmatpush1.msra.mxu0 %v388
          %457 = vmatprep.subr.mxu0 0.0
          %458 = vmatpush1.msra.mxu0 %v387
          %459 = vmatprep.subr.mxu0 0.0
          %460 = vmatpush1.msra.mxu0 %v386
          %461 = vmatprep.subr.mxu0 0.0
          %462 = vmatpush1.msra.mxu0 %v385
          %463 = vmatprep.subr.mxu0 0.0
          %464 = vmatpush1.msra.mxu0 %v384
          %465 = vmatprep.subr.mxu0 0.0
          %466 = vmatpush1.msra.mxu0 %v383
          %467 = vmatprep.subr.mxu0 0.0
          %468 = vmatpush2.msra.mxu0 0.0
          %469 = vmatprep.subr.mxu0 0.0
          %470 = vmatpush2.msra.mxu0 0.0
          %471 = vmatprep.subr.mxu0 0.0
          %472 = vmatpush2.msra.mxu0 0.0
          %473 = vmatprep.subr.mxu0 0.0
          %474 = vmatpush2.msra.mxu0 0.0
          %475 = vmatprep.subr.mxu0 0.0
          %476 = vmatpush2.msra.mxu0 0.0
          %477 = vmatprep.subr.mxu0 0.0
          %478 = vmatpush2.msra.mxu0 0.0
          %479 = vmatprep.subr.mxu0 0.0
          %480 = vmatpush2.msra.mxu0 0.0
          %481 = vmatprep.subr.mxu0 0.0
          %482 = vmatpush2.msra.mxu0 0.0
          %483 = vmatprep.subr.mxu0 0.0
          %484 = vmatpush2.msra.mxu0 0.0
          %485 = vmatprep.subr.mxu0 0.0
          %486 = vmatpush2.msra.mxu0 0.0
          %487 = vmatprep.subr.mxu0 0.0
          %488 = vmatpush2.msra.mxu0 0.0
          %489 = vmatprep.subr.mxu0 0.0
          %490 = vmatpush2.msra.mxu0 0.0
          %491 = vmatprep.subr.mxu0 0.0
          %492 = vmatpush2.msra.mxu0 0.0
          %493 = vmatprep.subr.mxu0 0.0
          %494 = vmatpush2.msra.mxu0 0.0
          %495 = vmatprep.subr.mxu0 0.0
          %496 = vmatpush2.msra.mxu0 0.0
          %497 = vmatprep.subr.mxu0 0.0
          %498 = vmatpush2.msra.mxu0 0.0
          %499 = vmatprep.mubr.f32.mxu0 0.0
          %500 = vmatmul.mubr.f32.gmra.mxu0 %v403
          %v501 = vpop.f32.mrf.mxu0
          %v502 = vadd.f32 0.0, %v501
          %v503 = vpop.f32.mrf.mxu0
          %504 = vmatprep.mubr.f32.mxu0 0.0
          %505 = vmatmul.mubr.f32.gmra.mxu0 %v404
          %v506 = vpop.f32.mrf.mxu0
          %v507 = vadd.f32 0.0, %v506
          %v508 = vpop.f32.mrf.mxu0
          %509 = vmatprep.mubr.f32.mxu0 0.0
          %510 = vmatmul.mubr.f32.gmra.mxu0 %v405
          %v511 = vpop.f32.mrf.mxu0
          %v512 = vadd.f32 0.0, %v511
          %v513 = vpop.f32.mrf.mxu0
          %514 = vmatprep.mubr.f32.mxu0 0.0
          %515 = vmatmul.mubr.f32.gmra.mxu0 %v406
          %v516 = vpop.f32.mrf.mxu0
          %v517 = vadd.f32 0.0, %v516
          %v518 = vpop.f32.mrf.mxu0
          %519 = vmatprep.mubr.f32.mxu0 0.0
          %520 = vmatmul.mubr.f32.gmra.mxu0 %v407
          %v521 = vpop.f32.mrf.mxu0
          %v522 = vadd.f32 0.0, %v521
          %v523 = vpop.f32.mrf.mxu0
          %524 = vmatprep.mubr.f32.mxu0 0.0
          %525 = vmatmul.mubr.f32.gmra.mxu0 %v408
          %v526 = vpop.f32.mrf.mxu0
          %v527 = vadd.f32 0.0, %v526
          %v528 = vpop.f32.mrf.mxu0
          %529 = vmatprep.mubr.f32.mxu0 0.0
          %530 = vmatmul.mubr.f32.gmra.mxu0 %v409
          %v531 = vpop.f32.mrf.mxu0
          %v532 = vadd.f32 0.0, %v531
          %v533 = vpop.f32.mrf.mxu0
          %534 = vmatprep.mubr.f32.mxu0 0.0
          %535 = vmatmul.mubr.f32.gmra.mxu0 %v410
          %v536 = vpop.f32.mrf.mxu0
          %v537 = vadd.f32 0.0, %v536
          %v538 = vpop.f32.mrf.mxu0
          %539 = vmatprep.mubr.f32.mxu0 0.0
          %540 = vmatmul.mubr.f32.gmra.mxu0 %v411
          %v541 = vpop.f32.mrf.mxu0
          %v542 = vadd.f32 0.0, %v541
          %v543 = vpop.f32.mrf.mxu0
          %544 = vmatprep.mubr.f32.mxu0 0.0
          %545 = vmatmul.mubr.f32.gmra.mxu0 %v412
          %v546 = vpop.f32.mrf.mxu0
          %v547 = vadd.f32 0.0, %v546
          %v548 = vpop.f32.mrf.mxu0
          %549 = vmatprep.mubr.f32.mxu0 0.0
          %550 = vmatmul.mubr.f32.gmra.mxu0 %v413
          %v551 = vpop.f32.mrf.mxu0
          %v552 = vadd.f32 0.0, %v551
          %v553 = vpop.f32.mrf.mxu0
          %554 = vmatprep.mubr.f32.mxu0 0.0
          %555 = vmatmul.mubr.f32.gmra.mxu0 %v414
          %v556 = vpop.f32.mrf.mxu0
          %v557 = vadd.f32 0.0, %v556
          %v558 = vpop.f32.mrf.mxu0
          %559 = vmatprep.mubr.f32.mxu0 0.0
          %560 = vmatmul.mubr.f32.gmra.mxu0 %v415
          %v561 = vpop.f32.mrf.mxu0
          %v562 = vadd.f32 0.0, %v561
          %v563 = vpop.f32.mrf.mxu0
          %564 = vmatprep.mubr.f32.mxu0 0.0
          %565 = vmatmul.mubr.f32.gmra.mxu0 %v416
          %v566 = vpop.f32.mrf.mxu0
          %v567 = vadd.f32 0.0, %v566
          %v568 = vpop.f32.mrf.mxu0
          %569 = vmatprep.mubr.f32.mxu0 0.0
          %570 = vmatmul.mubr.f32.gmra.mxu0 %v417
          %v571 = vpop.f32.mrf.mxu0
          %v572 = vadd.f32 0.0, %v571
          %v573 = vpop.f32.mrf.mxu0
          %574 = vmatprep.mubr.f32.mxu0 0.0
          %575 = vmatmul.mubr.f32.gmra.mxu0 %v418
          %v576 = vpop.f32.mrf.mxu0
          %v577 = vadd.f32 0.0, %v576
          %v578 = vpop.f32.mrf.mxu0
          %579 = vdwg.mxu0
          %v580 = vadd.f32 %v419, %v502
          %v581 = vadd.f32 %v420, %v507
          %v582 = vadd.f32 %v421, %v512
          %v583 = vadd.f32 %v422, %v517
          %v584 = vadd.f32 %v423, %v522
          %v585 = vadd.f32 %v424, %v527
          %v586 = vadd.f32 %v425, %v532
          %v587 = vadd.f32 %v426, %v537
          %v588 = vadd.f32 %v427, %v542
          %v589 = vadd.f32 %v428, %v547
          %v590 = vadd.f32 %v429, %v552
          %v591 = vadd.f32 %v430, %v557
          %v592 = vadd.f32 %v431, %v562
          %v593 = vadd.f32 %v432, %v567
          %v594 = vadd.f32 %v433, %v572
          %v595 = vadd.f32 %v434, %v577
          %596 = vst [vmem:[#allocation2] sm:$0xff] %v580
          %597 = vst [vmem:[#allocation2 + $0x8] sm:$0xff] %v581
          %598 = vst [vmem:[#allocation2 + $0x10] sm:$0xff] %v582
          %599 = vst [vmem:[#allocation2 + $0x18] sm:$0xff] %v583
          %600 = vst [vmem:[#allocation2 + $0x20] sm:$0xff] %v584
          %601 = vst [vmem:[#allocation2 + $0x28] sm:$0xff] %v585
          %602 = vst [vmem:[#allocation2 + $0x30] sm:$0xff] %v586
          %603 = vst [vmem:[#allocation2 + $0x38] sm:$0xff] %v587
          %604 = vst [vmem:[#allocation2 + $0x40] sm:$0xff] %v588
          %605 = vst [vmem:[#allocation2 + $0x48] sm:$0xff] %v589
          %606 = vst [vmem:[#allocation2 + $0x50] sm:$0xff] %v590
          %607 = vst [vmem:[#allocation2 + $0x58] sm:$0xff] %v591
          %608 = vst [vmem:[#allocation2 + $0x60] sm:$0xff] %v592
          %609 = vst [vmem:[#allocation2 + $0x68] sm:$0xff] %v593
          %610 = vst [vmem:[#allocation2 + $0x70] sm:$0xff] %v594
          %611 = vst [vmem:[#allocation2 + $0x78] sm:$0xff] %v595
        $region92: #{gg_forward.3} parent=79 // pred_fallthru
          _
        %p612 = scmp.eq.s32.totalorder %s19, 2
        // Predicated region
        $region93: #{gg_forward.3} parent=79 // pred_check
          %p613 = pneg %p612
        $region94: #{gg_forward.3} parent=79 // pred_check_branch
          %615 = sbr.rel (%p613) target = $region96
        $region95: #{gg_forward.3} parent=79 // pred_region
          %v616 = vld [vmem:[%s331] sm:$0xff]
          %v617 = vld [vmem:[%s331 + $0x8] sm:$0xff]
          %v618 = vld [vmem:[%s331 + $0x10] sm:$0xff]
          %v619 = vld [vmem:[%s331 + $0x18] sm:$0xff]
          %v620 = vld [vmem:[%s331 + $0x20] sm:$0xff]
          %v621 = vld [vmem:[%s331 + $0x28] sm:$0xff]
          %v622 = vld [vmem:[%s331 + $0x30] sm:$0xff]
          %v623 = vld [vmem:[%s331 + $0x38] sm:$0xff]
          %v624 = vld [vmem:[%s331 + $0x40] sm:$0xff]
          %v625 = vld [vmem:[%s331 + $0x48] sm:$0xff]
          %v626 = vld [vmem:[%s331 + $0x50] sm:$0xff]
          %v627 = vld [vmem:[%s331 + $0x58] sm:$0xff]
          %v628 = vld [vmem:[%s331 + $0x60] sm:$0xff]
          %v629 = vld [vmem:[%s331 + $0x68] sm:$0xff]
          %v630 = vld [vmem:[%s331 + $0x70] sm:$0xff]
          %v631 = vld [vmem:[%s331 + $0x78] sm:$0xff]
          %v632 = vlaneseq
          %v633 = vand.u32 %v632, 127
          %v634 = vstv %s381
          %v635 = vadd.s32 %v634, %v633
          %vm636 = vcmp.lt.s32.totalorder %v635, 300
          %v637 = vsel %vm636, %v616, 0.0
          %v638 = vsel %vm636, %v617, 0.0
          %v639 = vsel %vm636, %v618, 0.0
          %v640 = vsel %vm636, %v619, 0.0
          %v641 = vsel %vm636, %v620, 0.0
          %v642 = vsel %vm636, %v621, 0.0
          %v643 = vsel %vm636, %v622, 0.0
          %v644 = vsel %vm636, %v623, 0.0
          %v645 = vsel %vm636, %v624, 0.0
          %v646 = vsel %vm636, %v625, 0.0
          %v647 = vsel %vm636, %v626, 0.0
          %v648 = vsel %vm636, %v627, 0.0
          %v649 = vsel %vm636, %v628, 0.0
          %v650 = vsel %vm636, %v629, 0.0
          %v651 = vsel %vm636, %v630, 0.0
          %v652 = vsel %vm636, %v631, 0.0
          %v653 = vld [vmem:[#allocation2] sm:$0xff]
          %v654 = vld [vmem:[#allocation2 + $0x8] sm:$0xff]
          %v655 = vld [vmem:[#allocation2 + $0x10] sm:$0xff]
          %v656 = vld [vmem:[#allocation2 + $0x18] sm:$0xff]
          %v657 = vld [vmem:[#allocation2 + $0x20] sm:$0xff]
          %v658 = vld [vmem:[#allocation2 + $0x28] sm:$0xff]
          %v659 = vld [vmem:[#allocation2 + $0x30] sm:$0xff]
          %v660 = vld [vmem:[#allocation2 + $0x38] sm:$0xff]
          %v661 = vld [vmem:[#allocation2 + $0x40] sm:$0xff]
          %v662 = vld [vmem:[#allocation2 + $0x48] sm:$0xff]
          %v663 = vld [vmem:[#allocation2 + $0x50] sm:$0xff]
          %v664 = vld [vmem:[#allocation2 + $0x58] sm:$0xff]
          %v665 = vld [vmem:[#allocation2 + $0x60] sm:$0xff]
          %v666 = vld [vmem:[#allocation2 + $0x68] sm:$0xff]
          %v667 = vld [vmem:[#allocation2 + $0x70] sm:$0xff]
          %v668 = vld [vmem:[#allocation2 + $0x78] sm:$0xff]
          %669 = vmatprep.subr.mxu0 0.0
          %670 = vmatpush1.msra.mxu0 %v398
          %671 = vmatprep.subr.mxu0 0.0
          %672 = vmatpush1.msra.mxu0 %v397
          %673 = vmatprep.subr.mxu0 0.0
          %674 = vmatpush1.msra.mxu0 %v396
          %675 = vmatprep.subr.mxu0 0.0
          %676 = vmatpush1.msra.mxu0 %v395
          %677 = vmatprep.subr.mxu0 0.0
          %678 = vmatpush1.msra.mxu0 %v394
          %679 = vmatprep.subr.mxu0 0.0
          %680 = vmatpush1.msra.mxu0 %v393
          %681 = vmatprep.subr.mxu0 0.0
          %682 = vmatpush1.msra.mxu0 %v392
          %683 = vmatprep.subr.mxu0 0.0
          %684 = vmatpush1.msra.mxu0 %v391
          %685 = vmatprep.subr.mxu0 0.0
          %686 = vmatpush1.msra.mxu0 %v390
          %687 = vmatprep.subr.mxu0 0.0
          %688 = vmatpush1.msra.mxu0 %v389
          %689 = vmatprep.subr.mxu0 0.0
          %690 = vmatpush1.msra.mxu0 %v388
          %691 = vmatprep.subr.mxu0 0.0
          %692 = vmatpush1.msra.mxu0 %v387
          %693 = vmatprep.subr.mxu0 0.0
          %694 = vmatpush1.msra.mxu0 %v386
          %695 = vmatprep.subr.mxu0 0.0
          %696 = vmatpush1.msra.mxu0 %v385
          %697 = vmatprep.subr.mxu0 0.0
          %698 = vmatpush1.msra.mxu0 %v384
          %699 = vmatprep.subr.mxu0 0.0
          %700 = vmatpush1.msra.mxu0 %v383
          %701 = vmatprep.subr.mxu0 0.0
          %702 = vmatpush2.msra.mxu0 0.0
          %703 = vmatprep.subr.mxu0 0.0
          %704 = vmatpush2.msra.mxu0 0.0
          %705 = vmatprep.subr.mxu0 0.0
          %706 = vmatpush2.msra.mxu0 0.0
          %707 = vmatprep.subr.mxu0 0.0
          %708 = vmatpush2.msra.mxu0 0.0
          %709 = vmatprep.subr.mxu0 0.0
          %710 = vmatpush2.msra.mxu0 0.0
          %711 = vmatprep.subr.mxu0 0.0
          %712 = vmatpush2.msra.mxu0 0.0
          %713 = vmatprep.subr.mxu0 0.0
          %714 = vmatpush2.msra.mxu0 0.0
          %715 = vmatprep.subr.mxu0 0.0
          %716 = vmatpush2.msra.mxu0 0.0
          %717 = vmatprep.subr.mxu0 0.0
          %718 = vmatpush2.msra.mxu0 0.0
          %719 = vmatprep.subr.mxu0 0.0
          %720 = vmatpush2.msra.mxu0 0.0
          %721 = vmatprep.subr.mxu0 0.0
          %722 = vmatpush2.msra.mxu0 0.0
          %723 = vmatprep.subr.mxu0 0.0
          %724 = vmatpush2.msra.mxu0 0.0
          %725 = vmatprep.subr.mxu0 0.0
          %726 = vmatpush2.msra.mxu0 0.0
          %727 = vmatprep.subr.mxu0 0.0
          %728 = vmatpush2.msra.mxu0 0.0
          %729 = vmatprep.subr.mxu0 0.0
          %730 = vmatpush2.msra.mxu0 0.0
          %731 = vmatprep.subr.mxu0 0.0
          %732 = vmatpush2.msra.mxu0 0.0
          %733 = vmatprep.mubr.f32.mxu0 0.0
          %734 = vmatmul.mubr.f32.gmra.mxu0 %v637
          %v735 = vpop.f32.mrf.mxu0
          %v736 = vadd.f32 0.0, %v735
          %v737 = vpop.f32.mrf.mxu0
          %738 = vmatprep.mubr.f32.mxu0 0.0
          %739 = vmatmul.mubr.f32.gmra.mxu0 %v638
          %v740 = vpop.f32.mrf.mxu0
          %v741 = vadd.f32 0.0, %v740
          %v742 = vpop.f32.mrf.mxu0
          %743 = vmatprep.mubr.f32.mxu0 0.0
          %744 = vmatmul.mubr.f32.gmra.mxu0 %v639
          %v745 = vpop.f32.mrf.mxu0
          %v746 = vadd.f32 0.0, %v745
          %v747 = vpop.f32.mrf.mxu0
          %748 = vmatprep.mubr.f32.mxu0 0.0
          %749 = vmatmul.mubr.f32.gmra.mxu0 %v640
          %v750 = vpop.f32.mrf.mxu0
          %v751 = vadd.f32 0.0, %v750
          %v752 = vpop.f32.mrf.mxu0
          %753 = vmatprep.mubr.f32.mxu0 0.0
          %754 = vmatmul.mubr.f32.gmra.mxu0 %v641
          %v755 = vpop.f32.mrf.mxu0
          %v756 = vadd.f32 0.0, %v755
          %v757 = vpop.f32.mrf.mxu0
          %758 = vmatprep.mubr.f32.mxu0 0.0
          %759 = vmatmul.mubr.f32.gmra.mxu0 %v642
          %v760 = vpop.f32.mrf.mxu0
          %v761 = vadd.f32 0.0, %v760
          %v762 = vpop.f32.mrf.mxu0
          %763 = vmatprep.mubr.f32.mxu0 0.0
          %764 = vmatmul.mubr.f32.gmra.mxu0 %v643
          %v765 = vpop.f32.mrf.mxu0
          %v766 = vadd.f32 0.0, %v765
          %v767 = vpop.f32.mrf.mxu0
          %768 = vmatprep.mubr.f32.mxu0 0.0
          %769 = vmatmul.mubr.f32.gmra.mxu0 %v644
          %v770 = vpop.f32.mrf.mxu0
          %v771 = vadd.f32 0.0, %v770
          %v772 = vpop.f32.mrf.mxu0
          %773 = vmatprep.mubr.f32.mxu0 0.0
          %774 = vmatmul.mubr.f32.gmra.mxu0 %v645
          %v775 = vpop.f32.mrf.mxu0
          %v776 = vadd.f32 0.0, %v775
          %v777 = vpop.f32.mrf.mxu0
          %778 = vmatprep.mubr.f32.mxu0 0.0
          %779 = vmatmul.mubr.f32.gmra.mxu0 %v646
          %v780 = vpop.f32.mrf.mxu0
          %v781 = vadd.f32 0.0, %v780
          %v782 = vpop.f32.mrf.mxu0
          %783 = vmatprep.mubr.f32.mxu0 0.0
          %784 = vmatmul.mubr.f32.gmra.mxu0 %v647
          %v785 = vpop.f32.mrf.mxu0
          %v786 = vadd.f32 0.0, %v785
          %v787 = vpop.f32.mrf.mxu0
          %788 = vmatprep.mubr.f32.mxu0 0.0
          %789 = vmatmul.mubr.f32.gmra.mxu0 %v648
          %v790 = vpop.f32.mrf.mxu0
          %v791 = vadd.f32 0.0, %v790
          %v792 = vpop.f32.mrf.mxu0
          %793 = vmatprep.mubr.f32.mxu0 0.0
          %794 = vmatmul.mubr.f32.gmra.mxu0 %v649
          %v795 = vpop.f32.mrf.mxu0
          %v796 = vadd.f32 0.0, %v795
          %v797 = vpop.f32.mrf.mxu0
          %798 = vmatprep.mubr.f32.mxu0 0.0
          %799 = vmatmul.mubr.f32.gmra.mxu0 %v650
          %v800 = vpop.f32.mrf.mxu0
          %v801 = vadd.f32 0.0, %v800
          %v802 = vpop.f32.mrf.mxu0
          %803 = vmatprep.mubr.f32.mxu0 0.0
          %804 = vmatmul.mubr.f32.gmra.mxu0 %v651
          %v805 = vpop.f32.mrf.mxu0
          %v806 = vadd.f32 0.0, %v805
          %v807 = vpop.f32.mrf.mxu0
          %808 = vmatprep.mubr.f32.mxu0 0.0
          %809 = vmatmul.mubr.f32.gmra.mxu0 %v652
          %v810 = vpop.f32.mrf.mxu0
          %v811 = vadd.f32 0.0, %v810
          %v812 = vpop.f32.mrf.mxu0
          %813 = vdwg.mxu0
          %v814 = vadd.f32 %v653, %v736
          %v815 = vadd.f32 %v654, %v741
          %v816 = vadd.f32 %v655, %v746
          %v817 = vadd.f32 %v656, %v751
          %v818 = vadd.f32 %v657, %v756
          %v819 = vadd.f32 %v658, %v761
          %v820 = vadd.f32 %v659, %v766
          %v821 = vadd.f32 %v660, %v771
          %v822 = vadd.f32 %v661, %v776
          %v823 = vadd.f32 %v662, %v781
          %v824 = vadd.f32 %v663, %v786
          %v825 = vadd.f32 %v664, %v791
          %v826 = vadd.f32 %v665, %v796
          %v827 = vadd.f32 %v666, %v801
          %v828 = vadd.f32 %v667, %v806
          %v829 = vadd.f32 %v668, %v811
          %830 = vst [vmem:[#allocation2] sm:$0xff] %v814
          %831 = vst [vmem:[#allocation2 + $0x8] sm:$0xff] %v815
          %832 = vst [vmem:[#allocation2 + $0x10] sm:$0xff] %v816
          %833 = vst [vmem:[#allocation2 + $0x18] sm:$0xff] %v817
          %834 = vst [vmem:[#allocation2 + $0x20] sm:$0xff] %v818
          %835 = vst [vmem:[#allocation2 + $0x28] sm:$0xff] %v819
          %836 = vst [vmem:[#allocation2 + $0x30] sm:$0xff] %v820
          %837 = vst [vmem:[#allocation2 + $0x38] sm:$0xff] %v821
          %838 = vst [vmem:[#allocation2 + $0x40] sm:$0xff] %v822
          %839 = vst [vmem:[#allocation2 + $0x48] sm:$0xff] %v823
          %840 = vst [vmem:[#allocation2 + $0x50] sm:$0xff] %v824
          %841 = vst [vmem:[#allocation2 + $0x58] sm:$0xff] %v825
          %842 = vst [vmem:[#allocation2 + $0x60] sm:$0xff] %v826
          %843 = vst [vmem:[#allocation2 + $0x68] sm:$0xff] %v827
          %844 = vst [vmem:[#allocation2 + $0x70] sm:$0xff] %v828
          %845 = vst [vmem:[#allocation2 + $0x78] sm:$0xff] %v829
          %v846 = vld [vmem:[#allocation2] sm:$0xff]
          %v847 = vld [vmem:[#allocation2 + $0x8] sm:$0xff]
          %v848 = vld [vmem:[#allocation2 + $0x10] sm:$0xff]
          %v849 = vld [vmem:[#allocation2 + $0x18] sm:$0xff]
          %v850 = vld [vmem:[#allocation2 + $0x20] sm:$0xff]
          %v851 = vld [vmem:[#allocation2 + $0x28] sm:$0xff]
          %v852 = vld [vmem:[#allocation2 + $0x30] sm:$0xff]
          %v853 = vld [vmem:[#allocation2 + $0x38] sm:$0xff]
          %v854 = vld [vmem:[#allocation2 + $0x40] sm:$0xff]
          %v855 = vld [vmem:[#allocation2 + $0x48] sm:$0xff]
          %v856 = vld [vmem:[#allocation2 + $0x50] sm:$0xff]
          %v857 = vld [vmem:[#allocation2 + $0x58] sm:$0xff]
          %v858 = vld [vmem:[#allocation2 + $0x60] sm:$0xff]
          %v859 = vld [vmem:[#allocation2 + $0x68] sm:$0xff]
          %v860 = vld [vmem:[#allocation2 + $0x70] sm:$0xff]
          %v861 = vld [vmem:[#allocation2 + $0x78] sm:$0xff]
          %v862 = vld [vmem:[%s2] sm:$0x1]
          %v864 = vlaneseq
          %v865 = vshrl.u32 %v864, 7
          %v866 = vsub.s32 0, %v865
          %v867 = vrot.slane %v862, %v866
          %v869 = vadd.f32 %v846, %v867
          %v870 = vadd.f32 %v847, %v867
          %v871 = vadd.f32 %v848, %v867
          %v872 = vadd.f32 %v849, %v867
          %v873 = vadd.f32 %v850, %v867
          %v874 = vadd.f32 %v851, %v867
          %v875 = vadd.f32 %v852, %v867
          %v876 = vadd.f32 %v853, %v867
          %v877 = vadd.f32 %v854, %v867
          %v878 = vadd.f32 %v855, %v867
          %v879 = vadd.f32 %v856, %v867
          %v880 = vadd.f32 %v857, %v867
          %v881 = vadd.f32 %v858, %v867
          %v882 = vadd.f32 %v859, %v867
          %v883 = vadd.f32 %v860, %v867
          %v884 = vadd.f32 %v861, %v867
          %885 = vst [vmem:[%s350] sm:$0xff] %v869
          %886 = vst [vmem:[%s350 + $0x8] sm:$0xff] %v870
          %887 = vst [vmem:[%s350 + $0x10] sm:$0xff] %v871
          %888 = vst [vmem:[%s350 + $0x18] sm:$0xff] %v872
          %889 = vst [vmem:[%s350 + $0x20] sm:$0xff] %v873
          %890 = vst [vmem:[%s350 + $0x28] sm:$0xff] %v874
          %891 = vst [vmem:[%s350 + $0x30] sm:$0xff] %v875
          %892 = vst [vmem:[%s350 + $0x38] sm:$0xff] %v876
          %893 = vst [vmem:[%s350 + $0x40] sm:$0xff] %v877
          %894 = vst [vmem:[%s350 + $0x48] sm:$0xff] %v878
          %895 = vst [vmem:[%s350 + $0x50] sm:$0xff] %v879
          %896 = vst [vmem:[%s350 + $0x58] sm:$0xff] %v880
          %897 = vst [vmem:[%s350 + $0x60] sm:$0xff] %v881
          %898 = vst [vmem:[%s350 + $0x68] sm:$0xff] %v882
          %899 = vst [vmem:[%s350 + $0x70] sm:$0xff] %v883
          %900 = vst [vmem:[%s350 + $0x78] sm:$0xff] %v884
        $region96: #{gg_forward.3} parent=79 // pred_fallthru
          _
        %s901 = sand.u32 %s104, 1
        %s902 = sand.u32 %s104, 1
        %s903 = smul.addr %s902, 128
        %s904 = scalar_lea.vmem [#allocation4], %s903
        // Predicated region
        $region97: #{gg_forward.3} parent=79 // pred_check
          %p905 = pneg %p114
        $region98: #{gg_forward.3} parent=79 // pred_check_branch
          %907 = sbr.rel (%p905) target = $region100
        $region99: #{gg_forward.3} parent=79 // pred_region
          %s908 = smul.u32 16, %s18
          %s909 = ssub.s32 38, %s908
          %p910 = scmp.lt.s32.totalorder %s909, 16
          %s911 = scalar_select %p910, %s909, 16
          %s912 = smul.u32 128, %s911
          %p913 = scmp.ne.s32.totalorder 0, %s912
          %s914 = smul.addr %s908, 8
          %s915 = scalar_lea.vmem %s3, %s914
          // Predicated region
          $region101: #{gg_forward.3} parent=99 // pred_check
            %p916 = pneg %p913
          $region102: #{gg_forward.3} parent=99 // pred_check_branch
            %918 = sbr.rel (%p916) target = $region104
          $region103: #{gg_forward.3} parent=99 // pred_region
            // Predicated region
            $region105: #{gg_forward.3} parent=103 // pred_check
              _
            $region106: #{gg_forward.3} parent=103 // pred_check_branch
              %920 = sbr.rel (0) target = $region108
            $region107: #{gg_forward.3} parent=103 // pred_region
              // Predicated region
              $region127: #{gg_forward.3} parent=107 // pred_check
                _
              $region128: #{gg_forward.3} parent=107 // pred_check_branch
                %1000 = sbr.rel (0) target = $region130
              $region129: #{gg_forward.3} parent=107 // pred_region
                %s1001 = sshrl.u32 %s911, 4
                // While loop
                $region131: #{gg_forward.3} parent=129 // loop_pre_header
                  _
                $region132: #{gg_forward.3} parent=129 // loop_header
                  %s1003 = sphi 0, %s1005
                  %p1004 = scmp.ge.s32.totalorder %s1003, %s1001
                  %s1008 = sphi 0, %s1045
                  %s1009 = sphi %s904, %s1048
                  %s1010 = sphi %s915, %s1049
                $region133: #{gg_forward.3} parent=129 // loop_header_branch
                  %1007 = sbr.rel (%p1004) target = $region137
                $region134: #{gg_forward.3} parent=129 // loop_body
                  %v1011 = vld [vmem:[%s1009] sm:$0xff]
                  %1012 = vst [vmem:[%s1010] sm:$0xff] %v1011
                  %v1013 = vld [vmem:[%s1009 + $0x8] sm:$0xff]
                  %1014 = vst [vmem:[%s1010 + $0x8] sm:$0xff] %v1013
                  %v1015 = vld [vmem:[%s1009 + $0x10] sm:$0xff]
                  %1016 = vst [vmem:[%s1010 + $0x10] sm:$0xff] %v1015
                  %v1017 = vld [vmem:[%s1009 + $0x18] sm:$0xff]
                  %1018 = vst [vmem:[%s1010 + $0x18] sm:$0xff] %v1017
                  %v1019 = vld [vmem:[%s1009 + $0x20] sm:$0xff]
                  %1020 = vst [vmem:[%s1010 + $0x20] sm:$0xff] %v1019
                  %v1021 = vld [vmem:[%s1009 + $0x28] sm:$0xff]
                  %1022 = vst [vmem:[%s1010 + $0x28] sm:$0xff] %v1021
                  %v1023 = vld [vmem:[%s1009 + $0x30] sm:$0xff]
                  %1024 = vst [vmem:[%s1010 + $0x30] sm:$0xff] %v1023
                  %v1025 = vld [vmem:[%s1009 + $0x38] sm:$0xff]
                  %1026 = vst [vmem:[%s1010 + $0x38] sm:$0xff] %v1025
                  %v1027 = vld [vmem:[%s1009 + $0x40] sm:$0xff]
                  %1028 = vst [vmem:[%s1010 + $0x40] sm:$0xff] %v1027
                  %v1029 = vld [vmem:[%s1009 + $0x48] sm:$0xff]
                  %1030 = vst [vmem:[%s1010 + $0x48] sm:$0xff] %v1029
                  %v1031 = vld [vmem:[%s1009 + $0x50] sm:$0xff]
                  %1032 = vst [vmem:[%s1010 + $0x50] sm:$0xff] %v1031
                  %v1033 = vld [vmem:[%s1009 + $0x58] sm:$0xff]
                  %1034 = vst [vmem:[%s1010 + $0x58] sm:$0xff] %v1033
                  %v1035 = vld [vmem:[%s1009 + $0x60] sm:$0xff]
                  %1036 = vst [vmem:[%s1010 + $0x60] sm:$0xff] %v1035
                  %v1037 = vld [vmem:[%s1009 + $0x68] sm:$0xff]
                  %1038 = vst [vmem:[%s1010 + $0x68] sm:$0xff] %v1037
                  %v1039 = vld [vmem:[%s1009 + $0x70] sm:$0xff]
                  %1040 = vst [vmem:[%s1010 + $0x70] sm:$0xff] %v1039
                  %v1041 = vld [vmem:[%s1009 + $0x78] sm:$0xff]
                  %1042 = vst [vmem:[%s1010 + $0x78] sm:$0xff] %v1041
                  %s1043 = sadd.s32 1, %s1008
                  %p1044 = scmp.ge.s32.totalorder %s1043, %s1001
                  %s1045 = scalar_select %p1044, 0, %s1043
                  %s1046 = smul.u32 %s1045, 128
                  %s1047 = smul.u32 %s1045, 128
                  %s1048 = scalar_lea.vmem %s904, %s1046 [#allocation4]
                  %s1049 = scalar_lea.vmem %s915, %s1047
                $region135: #{gg_forward.3} parent=129 // loop_footer
                  %s1005 = sadd.s32 %s1003, 1
                $region136: #{gg_forward.3} parent=129 // loop_footer_branch
                  %1002 = sbr.rel target = $region132
                $region137: #{gg_forward.3} parent=129 // loop_exit
                  _
                %s1050 = sshrl.u32 %s911, 4
                %s1051 = sand.u32 %s911, 15
                %s1052 = smul.u32 %s1050, 16
                %s1053 = smul.u32 8, %s1052
                %s1054 = scalar_lea.vmem %s904, %s1053 [#allocation4]
                %s1055 = smul.u32 8, %s1052
                %s1056 = scalar_lea.vmem %s915, %s1055
                // While loop
                $region138: #{gg_forward.3} parent=129 // loop_pre_header
                  _
                $region139: #{gg_forward.3} parent=129 // loop_header
                  %s1058 = sphi 0, %s1060
                  %p1059 = scmp.ge.s32.totalorder %s1058, %s1051
                  %s1063 = sphi 0, %s1070
                  %s1064 = sphi %s1054, %s1073
                  %s1065 = sphi %s1056, %s1074
                $region140: #{gg_forward.3} parent=129 // loop_header_branch
                  %1062 = sbr.rel (%p1059) target = $region144
                $region141: #{gg_forward.3} parent=129 // loop_body
                  %v1066 = vld [vmem:[%s1064] sm:$0xff]
                  %1067 = vst [vmem:[%s1065] sm:$0xff] %v1066
                  %s1068 = sadd.s32 1, %s1063
                  %p1069 = scmp.ge.s32.totalorder %s1068, %s1051
                  %s1070 = scalar_select %p1069, 0, %s1068
                  %s1071 = smul.u32 %s1070, 8
                  %s1072 = smul.u32 %s1070, 8
                  %s1073 = scalar_lea.vmem %s1054, %s1071 [#allocation4]
                  %s1074 = scalar_lea.vmem %s1056, %s1072
                $region142: #{gg_forward.3} parent=129 // loop_footer
                  %s1060 = sadd.s32 %s1058, 1
                $region143: #{gg_forward.3} parent=129 // loop_footer_branch
                  %1057 = sbr.rel target = $region139
                $region144: #{gg_forward.3} parent=129 // loop_exit
                  _
              $region130: #{gg_forward.3} parent=107 // pred_fallthru
                _
              // Predicated region
              $region145: #{gg_forward.3} parent=107 // pred_check
                _
              $region146: #{gg_forward.3} parent=107 // pred_check_branch
                %1076 = sbr.rel target = $region148
              $region147: #{gg_forward.3} parent=107 // pred_region
                _
              $region148: #{gg_forward.3} parent=107 // pred_fallthru
                _
            $region108: #{gg_forward.3} parent=103 // pred_fallthru
              _
            // Predicated region
            $region109: #{gg_forward.3} parent=103 // pred_check
              _
            $region110: #{gg_forward.3} parent=103 // pred_check_branch
              %922 = sbr.rel target = $region112
            $region111: #{gg_forward.3} parent=103 // pred_region
              %s924 = ssub.s32 256, 1
              %s925 = sshrl.u32 %s911, 4
              // While loop
              $region113: #{gg_forward.3} parent=111 // loop_pre_header
                _
              $region114: #{gg_forward.3} parent=111 // loop_header
                %s927 = sphi 0, %s929
                %p928 = scmp.ge.s32.totalorder %s927, %s925
                %s932 = sphi 0, %s969
                %s933 = sphi %s904, %s972
                %s934 = sphi %s915, %s973
              $region115: #{gg_forward.3} parent=111 // loop_header_branch
                %931 = sbr.rel (%p928) target = $region119
              $region116: #{gg_forward.3} parent=111 // loop_body
                %v935 = vld [vmem:[%s933] sm:%s924]
                %936 = vst [vmem:[%s934] sm:%s924] %v935
                %v937 = vld [vmem:[%s933 + $0x8] sm:%s924]
                %938 = vst [vmem:[%s934 + $0x8] sm:%s924] %v937
                %v939 = vld [vmem:[%s933 + $0x10] sm:%s924]
                %940 = vst [vmem:[%s934 + $0x10] sm:%s924] %v939
                %v941 = vld [vmem:[%s933 + $0x18] sm:%s924]
                %942 = vst [vmem:[%s934 + $0x18] sm:%s924] %v941
                %v943 = vld [vmem:[%s933 + $0x20] sm:%s924]
                %944 = vst [vmem:[%s934 + $0x20] sm:%s924] %v943
                %v945 = vld [vmem:[%s933 + $0x28] sm:%s924]
                %946 = vst [vmem:[%s934 + $0x28] sm:%s924] %v945
                %v947 = vld [vmem:[%s933 + $0x30] sm:%s924]
                %948 = vst [vmem:[%s934 + $0x30] sm:%s924] %v947
                %v949 = vld [vmem:[%s933 + $0x38] sm:%s924]
                %950 = vst [vmem:[%s934 + $0x38] sm:%s924] %v949
                %v951 = vld [vmem:[%s933 + $0x40] sm:%s924]
                %952 = vst [vmem:[%s934 + $0x40] sm:%s924] %v951
                %v953 = vld [vmem:[%s933 + $0x48] sm:%s924]
                %954 = vst [vmem:[%s934 + $0x48] sm:%s924] %v953
                %v955 = vld [vmem:[%s933 + $0x50] sm:%s924]
                %956 = vst [vmem:[%s934 + $0x50] sm:%s924] %v955
                %v957 = vld [vmem:[%s933 + $0x58] sm:%s924]
                %958 = vst [vmem:[%s934 + $0x58] sm:%s924] %v957
                %v959 = vld [vmem:[%s933 + $0x60] sm:%s924]
                %960 = vst [vmem:[%s934 + $0x60] sm:%s924] %v959
                %v961 = vld [vmem:[%s933 + $0x68] sm:%s924]
                %962 = vst [vmem:[%s934 + $0x68] sm:%s924] %v961
                %v963 = vld [vmem:[%s933 + $0x70] sm:%s924]
                %964 = vst [vmem:[%s934 + $0x70] sm:%s924] %v963
                %v965 = vld [vmem:[%s933 + $0x78] sm:%s924]
                %966 = vst [vmem:[%s934 + $0x78] sm:%s924] %v965
                %s967 = sadd.s32 1, %s932
                %p968 = scmp.ge.s32.totalorder %s967, %s925
                %s969 = scalar_select %p968, 0, %s967
                %s970 = smul.u32 %s969, 128
                %s971 = smul.u32 %s969, 128
                %s972 = scalar_lea.vmem %s904, %s970 [#allocation4]
                %s973 = scalar_lea.vmem %s915, %s971
              $region117: #{gg_forward.3} parent=111 // loop_footer
                %s929 = sadd.s32 %s927, 1
              $region118: #{gg_forward.3} parent=111 // loop_footer_branch
                %926 = sbr.rel target = $region114
              $region119: #{gg_forward.3} parent=111 // loop_exit
                _
              %s974 = sshrl.u32 %s911, 4
              %s975 = sand.u32 %s911, 15
              %s976 = smul.u32 %s974, 16
              %s977 = smul.u32 8, %s976
              %s978 = scalar_lea.vmem %s904, %s977 [#allocation4]
              %s979 = smul.u32 8, %s976
              %s980 = scalar_lea.vmem %s915, %s979
              // While loop
              $region120: #{gg_forward.3} parent=111 // loop_pre_header
                _
              $region121: #{gg_forward.3} parent=111 // loop_header
                %s982 = sphi 0, %s984
                %p983 = scmp.ge.s32.totalorder %s982, %s975
                %s987 = sphi 0, %s994
                %s988 = sphi %s978, %s997
                %s989 = sphi %s980, %s998
              $region122: #{gg_forward.3} parent=111 // loop_header_branch
                %986 = sbr.rel (%p983) target = $region126
              $region123: #{gg_forward.3} parent=111 // loop_body
                %v990 = vld [vmem:[%s988] sm:%s924]
                %991 = vst [vmem:[%s989] sm:%s924] %v990
                %s992 = sadd.s32 1, %s987
                %p993 = scmp.ge.s32.totalorder %s992, %s975
                %s994 = scalar_select %p993, 0, %s992
                %s995 = smul.u32 %s994, 8
                %s996 = smul.u32 %s994, 8
                %s997 = scalar_lea.vmem %s978, %s995 [#allocation4]
                %s998 = scalar_lea.vmem %s980, %s996
              $region124: #{gg_forward.3} parent=111 // loop_footer
                %s984 = sadd.s32 %s982, 1
              $region125: #{gg_forward.3} parent=111 // loop_footer_branch
                %981 = sbr.rel target = $region121
              $region126: #{gg_forward.3} parent=111 // loop_exit
                _
            $region112: #{gg_forward.3} parent=103 // pred_fallthru
              _
          $region104: #{gg_forward.3} parent=99 // pred_fallthru
            _
          %1077 = vnop
        $region100: #{gg_forward.3} parent=79 // pred_fallthru
          _
      $region80: #{gg_forward.3} parent=5 // pred_fallthru
        _
      %p1078 = scmp.le.s32.totalorder 2, %s9
      // Predicated region
      $region149: #{gg_forward.3} parent=5 // pred_check
        %p1079 = pneg %p1078
      $region150: #{gg_forward.3} parent=5 // pred_check_branch
        %1081 = sbr.rel (%p1079) target = $region152
      $region151: #{gg_forward.3} parent=5 // pred_region
        %s1082 = ssub.s32 %s9, 2
        // Predicated region
        $region153: #{gg_forward.3} parent=151 // pred_check
          %p1083 = pneg %p120
        $region154: #{gg_forward.3} parent=151 // pred_check_branch
          %1085 = sbr.rel (%p1083) target = $region156
        $region155: #{gg_forward.3} parent=151 // pred_region
          %s1086 = sand.u32 %s105, 1
          %s1087 = sand.u32 %s105, 1
          %s1088 = smul.addr %s1087, 128
          %s1089 = scalar_lea.vmem [#allocation4], %s1088
        $region156: #{gg_forward.3} parent=151 // pred_fallthru
          _
      $region152: #{gg_forward.3} parent=5 // pred_fallthru
        _
    $region6: #{gg_forward.3} parent=1 // loop_footer
      %s13 = sadd.s32 1, %s9
    $region7: #{gg_forward.3} parent=1 // loop_footer_branch
      %8 = sbr.rel target = $region3
    $region8: #{gg_forward.3} parent=1 // loop_exit
      _

</llo_original>
